<compile_context>
chip_gen: v7x
topology: tpu7x:2x2x1
jax: 0.10.0
libtpu: 0.0.40
codegen_flags: <defaults>
</compile_context>

<pallas_src>
import functools

import jax
import jax.numpy as jnp
import numpy as np
from jax import lax
from jax.experimental import pallas as pl
from jax.experimental.pallas import tpu as pltpu


# ----------------------------------------------------------------------------
# Phase 1: input projection  gx[t, b, :] = x[t, b, :] @ W_ih_cat + bias_x
# (fully parallel over time; one MXU matmul per chunk of Tc*Bp rows)
# ----------------------------------------------------------------------------
def input_proj_kernel(x_ref, w_ref, b_ref, o_ref):
    o_ref[...] = (
        jnp.dot(x_ref[...], w_ref[...], preferred_element_type=jnp.float32)
        + b_ref[...]
    ).astype(o_ref.dtype)


# ----------------------------------------------------------------------------
# Phase 2: sequential GRU recurrence over time chunks.
# The hidden state lives in the resident (constant index_map) output block.
# ----------------------------------------------------------------------------
def gru_recurrence_kernel(gx_ref, whh_ref, bhn_ref, h_ref, *, seq_len):
    c = pl.program_id(0)
    Tc = gx_ref.shape[0]          # static chunk length
    Hp = whh_ref.shape[0]         # static padded hidden size

    @pl.when(c == 0)
    def _():
        h_ref[...] = jnp.zeros_like(h_ref)

    whh = whh_ref[...]            # (Hp, 3Hp) — loaded once per chunk
    bhn = bhn_ref[...]            # (1, Hp)

    def step(t, h):
        g_x = gx_ref[t]           # (Bp, 3Hp) precomputed input gates (+ biases)
        # single gate-concatenated matmul on the serial path
        g_h = jnp.dot(h, whh, preferred_element_type=jnp.float32)  # (Bp, 3Hp)
        # fused sigmoid over the r|z slab
        rz = jax.nn.sigmoid(g_x[:, : 2 * Hp] + g_h[:, : 2 * Hp])
        r = rz[:, :Hp]
        z = rz[:, Hp:]
        n = jnp.tanh(g_x[:, 2 * Hp:] + r * (g_h[:, 2 * Hp:] + bhn))
        h_new = (1.0 - z) * n + z * h
        # mask padded timesteps (T padded up to a multiple of Tc)
        return jnp.where(c * Tc + t < seq_len, h_new, h)

    h_ref[...] = lax.fori_loop(0, Tc, step, h_ref[...], unroll=True)


def _round_up(n, m):
    return ((n + m - 1) // m) * m


@functools.partial(jax.jit, static_argnames=("time_chunk",))
def recurrent_encoder(x, w_ih, w_hh, b_ih, b_hh, *, time_chunk=16):
    """x: (B, T, F) float32 (batch_first).  Returns h_n of shape (1, B, H)."""
    B, T, F = x.shape
    H = w_hh.shape[-1]
    f32 = jnp.float32

    if T == 0:  # empty sequence -> h0 (guard: grid would never write output)
        return jnp.zeros((1, B, H), f32)

    Bp = _round_up(B, 8)            # sublane alignment
    Hp = _round_up(H, 128)          # lane alignment
    Tc = min(T, time_chunk)
    n_chunks = pl.cdiv(T, Tc)
    T_pad = n_chunks * Tc
    G = 3 * Hp

    # ---- one-time parameter layout plumbing (wrapper side) ------------------
    w_ih_p = jnp.pad(w_ih.astype(f32), ((0, 0), (0, 0), (0, Hp - H)))        # (3,F,Hp)
    w_hh_p = jnp.pad(w_hh.astype(f32), ((0, 0), (0, Hp - H), (0, Hp - H)))   # (3,Hp,Hp)
    wih_cat = jnp.transpose(w_ih_p, (1, 0, 2)).reshape(F, G)                 # (F, 3Hp)
    whh_cat = jnp.transpose(w_hh_p, (1, 0, 2)).reshape(Hp, G)                # (Hp,3Hp)

    b_ih_p = jnp.pad(b_ih.astype(f32), ((0, 0), (0, 0), (0, Hp - H)))        # (3,1,Hp)
    b_hh_p = jnp.pad(b_hh.astype(f32), ((0, 0), (0, 0), (0, Hp - H)))
    # fold b_ih (all gates) and b_hh (r,z gates) into the parallel projection;
    # only b_hh[n] must stay on the recurrent path (r * (h@W_hn + b_hn)).
    bias_x = jnp.concatenate(
        [b_ih_p[0] + b_hh_p[0], b_ih_p[1] + b_hh_p[1], b_ih_p[2]], axis=-1)  # (1,3Hp)
    bias_hn = b_hh_p[2]                                                      # (1, Hp)

    # ---- input: batch_first -> time-major, pad B and T ----------------------
    x_tm = jnp.transpose(x.astype(f32), (1, 0, 2))                 # (T, B, F)
    x_tm = jnp.pad(x_tm, ((0, T_pad - T), (0, Bp - B), (0, 0)))    # (T_pad, Bp, F)
    x_flat = x_tm.reshape(T_pad * Bp, F)

    rows = Tc * Bp

    # ---- Phase 1: hoisted input projection (parallel grid) ------------------
    gx_flat = pl.pallas_call(
        input_proj_kernel,
        out_shape=jax.ShapeDtypeStruct((T_pad * Bp, G), f32),
        grid_spec=pltpu.PrefetchScalarGridSpec(
            num_scalar_prefetch=0,
            grid=(n_chunks,),
            in_specs=[
                pl.BlockSpec((rows, F), lambda c: (c, 0)),   # x rows for chunk c
                pl.BlockSpec((F, G), lambda c: (0, 0)),      # W_ih (gate-concat)
                pl.BlockSpec((1, G), lambda c: (0, 0)),      # folded biases
            ],
            out_specs=pl.BlockSpec((rows, G), lambda c: (c, 0)),
        ),
        compiler_params=pltpu.CompilerParams(
            dimension_semantics=("parallel",)),
    )(x_flat, wih_cat, bias_x)

    gx = gx_flat.reshape(T_pad, Bp, G)

    # ---- Phase 2: sequential recurrence over time chunks --------------------
    h_last = pl.pallas_call(
        functools.partial(gru_recurrence_kernel, seq_len=T),
        out_shape=jax.ShapeDtypeStruct((Bp, Hp), f32),
        grid_spec=pltpu.PrefetchScalarGridSpec(
            num_scalar_prefetch=0,
            grid=(n_chunks,),
            in_specs=[
                pl.BlockSpec((Tc, Bp, G), lambda c: (c, 0, 0)),  # gate inputs
                pl.BlockSpec((Hp, G), lambda c: (0, 0)),         # W_hh (gate-concat)
                pl.BlockSpec((1, Hp), lambda c: (0, 0)),         # b_hh[n]
            ],
            out_specs=pl.BlockSpec((Bp, Hp), lambda c: (0, 0)),  # resident h carry
        ),
        compiler_params=pltpu.CompilerParams(
            dimension_semantics=("arbitrary",)),                 # true recurrence
    )(gx, whh_cat, bias_hn)

    return h_last[None, :B, :H]


# ----------------------------------------------------------------------------
# Pure-JAX reference (matches torch.nn.GRU, batch_first, h0 = 0)
# ----------------------------------------------------------------------------
def gru_reference(x, w_ih, w_hh, b_ih, b_hh):
    B, T, F = x.shape
    H = w_hh.shape[-1]
    h0 = jnp.zeros((B, H), jnp.float32)

    def step(h, x_t):
        i_r = x_t @ w_ih[0] + b_ih[0]
        i_z = x_t @ w_ih[1] + b_ih[1]
        i_n = x_t @ w_ih[2] + b_ih[2]
        h_r = h @ w_hh[0] + b_hh[0]
        h_z = h @ w_hh[1] + b_hh[1]
        h_n = h @ w_hh[2] + b_hh[2]
        r = jax.nn.sigmoid(i_r + h_r)
        z = jax.nn.sigmoid(i_z + h_z)
        n = jnp.tanh(i_n + r * h_n)
        return (1.0 - z) * n + z * h, None

    h_last, _ = lax.scan(step, h0, jnp.transpose(x, (1, 0, 2)))
    return h_last[None]


if __name__ == "__main__":
    # Small shapes consistent with the module: batch=2, seq=8, n_features=4, latent_dim=32
    B, T, F, H = 2, 8, 4, 32

    key = jax.random.PRNGKey(0)
    k_x, k_wih, k_whh, k_bih, k_bhh = jax.random.split(key, 5)

    # Deterministic parameter init, PyTorch-style uniform(-1/sqrt(H), 1/sqrt(H)).
    bound = 1.0 / np.sqrt(H)
    x = jax.random.normal(k_x, (B, T, F), dtype=jnp.float32)
    w_ih = jax.random.uniform(k_wih, (3, F, H), jnp.float32, -bound, bound)
    w_hh = jax.random.uniform(k_whh, (3, H, H), jnp.float32, -bound, bound)
    b_ih = jax.random.uniform(k_bih, (3, 1, H), jnp.float32, -bound, bound)
    b_hh = jax.random.uniform(k_bhh, (3, 1, H), jnp.float32, -bound, bound)

    h_n = recurrent_encoder(x, w_ih, w_hh, b_ih, b_hh)
    h_n = jax.block_until_ready(h_n)

    h_ref = jax.block_until_ready(gru_reference(x, w_ih, w_hh, b_ih, b_hh))
    np.testing.assert_allclose(np.asarray(h_n), np.asarray(h_ref), rtol=1e-5, atol=1e-5)

    assert h_n.shape == (1, B, H)
    print("KERNEL_OK")
</pallas_src>

<mosaic_0001>
module attributes {stable_mosaic.version = 11 : i64} {
  func.func @input_proj_kernel(%arg0: i32, %arg1: memref<64x4xf32, #tpu.memory_space<vmem>>, %arg2: memref<4x384xf32, #tpu.memory_space<vmem>>, %arg3: memref<1x384xf32, #tpu.memory_space<vmem>>, %arg4: memref<64x384xf32, #tpu.memory_space<vmem>>) attributes {dimension_semantics = [#tpu.dimension_semantics<parallel>], iteration_bounds = array<i64: 1>, scalar_prefetch = 0 : i64, scratch_operands = 0 : i64, tpu.core_type = #tpu.core_type<tc>, window_params = [{transform_indices = @transform_0, window_bounds = array<i64: 64, 4>}, {pipeline_mode = #tpu.pipeline_mode<synchronous>, transform_indices = @transform_1, window_bounds = array<i64: 4, 384>}, {pipeline_mode = #tpu.pipeline_mode<synchronous>, transform_indices = @transform_2, window_bounds = array<i64: 1, 384>}, {transform_indices = @transform_3, window_bounds = array<i64: 64, 384>}]} {
    %c0 = arith.constant 0 : index
    %c0_0 = arith.constant 0 : index
    %0 = vector.load %arg1[%c0, %c0_0] : memref<64x4xf32, #tpu.memory_space<vmem>>, vector<64x4xf32>
    %c0_1 = arith.constant 0 : index
    %c0_2 = arith.constant 0 : index
    %1 = vector.load %arg2[%c0_1, %c0_2] : memref<4x384xf32, #tpu.memory_space<vmem>>, vector<4x384xf32>
    %cst = arith.constant dense<0.000000e+00> : vector<64x384xf32>
    %2 = tpu.matmul %0, %1, %cst {dimension_numbers = #tpu.dot_dimension_numbers<[1], [0], [0], [1], [0, 0, 1, 1], [], []>} : vector<64x4xf32>, vector<4x384xf32>, vector<64x384xf32> -> vector<64x384xf32>
    %c0_3 = arith.constant 0 : index
    %c0_4 = arith.constant 0 : index
    %3 = vector.load %arg3[%c0_3, %c0_4] : memref<1x384xf32, #tpu.memory_space<vmem>>, vector<1x384xf32>
    %4 = vector.broadcast %3 : vector<1x384xf32> to vector<64x384xf32>
    %5 = arith.addf %2, %4 : vector<64x384xf32>
    %c0_5 = arith.constant 0 : index
    %c0_6 = arith.constant 0 : index
    %6 = vector.load %arg4[%c0_5, %c0_6] : memref<64x384xf32, #tpu.memory_space<vmem>>, vector<64x384xf32>
    tpu.vector_store %arg4[%c0_5, %c0_6], %5 {strides = array<i32>} : memref<64x384xf32, #tpu.memory_space<vmem>>, vector<64x384xf32>,
    return
  }
  func.func @transform_0(%arg0: i32) -> (i32, i32) {
    %c0_i32 = arith.constant 0 : i32
    %c0_i32_0 = arith.constant 0 : i32
    return %arg0, %c0_i32 : i32, i32
  }
  func.func @transform_1(%arg0: i32) -> (i32, i32) {
    %c0_i32 = arith.constant 0 : i32
    %c0_i32_0 = arith.constant 0 : i32
    %c0_i32_1 = arith.constant 0 : i32
    return %c0_i32, %c0_i32_0 : i32, i32
  }
  func.func @transform_2(%arg0: i32) -> (i32, i32) {
    %c0_i32 = arith.constant 0 : i32
    %c0_i32_0 = arith.constant 0 : i32
    %c0_i32_1 = arith.constant 0 : i32
    return %c0_i32, %c0_i32_0 : i32, i32
  }
  func.func @transform_3(%arg0: i32) -> (i32, i32) {
    %c0_i32 = arith.constant 0 : i32
    %c0_i32_0 = arith.constant 0 : i32
    return %arg0, %c0_i32 : i32, i32
  }
}

module attributes {stable_mosaic.version = 11 : i64} {
  func.func @gru_recurrence_kernel(%arg0: i32, %arg1: memref<8x8x384xf32, #tpu.memory_space<vmem>>, %arg2: memref<128x384xf32, #tpu.memory_space<vmem>>, %arg3: memref<1x128xf32, #tpu.memory_space<vmem>>, %arg4: memref<8x128xf32, #tpu.memory_space<vmem>>) attributes {dimension_semantics = [#tpu.dimension_semantics<arbitrary>], iteration_bounds = array<i64: 1>, scalar_prefetch = 0 : i64, scratch_operands = 0 : i64, tpu.core_type = #tpu.core_type<tc>, window_params = [{transform_indices = @transform_0, window_bounds = array<i64: 8, 8, 384>}, {pipeline_mode = #tpu.pipeline_mode<synchronous>, transform_indices = @transform_1, window_bounds = array<i64: 128, 384>}, {pipeline_mode = #tpu.pipeline_mode<synchronous>, transform_indices = @transform_2, window_bounds = array<i64: 1, 128>}, {pipeline_mode = #tpu.pipeline_mode<synchronous>, transform_indices = @transform_3, window_bounds = array<i64: 8, 128>}]} {
    %c0_i32 = arith.constant 0 : i32
    %0 = arith.cmpi eq, %arg0, %c0_i32 : i32
    %1 = arith.extui %0 : i1 to i32
    %c0_i32_0 = arith.constant 0 : i32
    %2 = arith.cmpi ne, %1, %c0_i32_0 : i32
    scf.if %2 {
      %cst_64 = arith.constant 0.000000e+00 : f32
      %247 = vector.broadcast %cst_64 : f32 to vector<8x128xf32>
      %c0_65 = arith.constant 0 : index
      %c0_66 = arith.constant 0 : index
      %248 = vector.load %arg4[%c0_65, %c0_66] : memref<8x128xf32, #tpu.memory_space<vmem>>, vector<8x128xf32>
      tpu.vector_store %arg4[%c0_65, %c0_66], %247 {strides = array<i32>} : memref<8x128xf32, #tpu.memory_space<vmem>>, vector<8x128xf32>,
    } else {
    }
    %c0 = arith.constant 0 : index
    %c0_1 = arith.constant 0 : index
    %3 = vector.load %arg2[%c0, %c0_1] : memref<128x384xf32, #tpu.memory_space<vmem>>, vector<128x384xf32>
    %c0_2 = arith.constant 0 : index
    %c0_3 = arith.constant 0 : index
    %4 = vector.load %arg3[%c0_2, %c0_3] : memref<1x128xf32, #tpu.memory_space<vmem>>, vector<1x128xf32>
    %c0_4 = arith.constant 0 : index
    %c0_5 = arith.constant 0 : index
    %5 = vector.load %arg4[%c0_4, %c0_5] : memref<8x128xf32, #tpu.memory_space<vmem>>, vector<8x128xf32>
    %c0_i32_6 = arith.constant 0 : i32
    %6 = arith.index_cast %c0_i32_6 : i32 to index
    %c0_7 = arith.constant 0 : index
    %c0_8 = arith.constant 0 : index
    %7 = vector.load %arg1[%6, %c0_7, %c0_8] : memref<8x8x384xf32, #tpu.memory_space<vmem>>, vector<1x8x384xf32>
    %8 = vector.shape_cast %7 : vector<1x8x384xf32> to vector<8x384xf32>
    %cst = arith.constant dense<0.000000e+00> : vector<8x384xf32>
    %9 = tpu.matmul %5, %3, %cst {dimension_numbers = #tpu.dot_dimension_numbers<[1], [0], [0], [1], [0, 0, 1, 1], [], []>} : vector<8x128xf32>, vector<128x384xf32>, vector<8x384xf32> -> vector<8x384xf32>
    %10 = vector.extract_strided_slice %8 {offsets = [0, 0], sizes = [8, 256], strides = [1, 1]} : vector<8x384xf32> to vector<8x256xf32>
    %11 = vector.extract_strided_slice %9 {offsets = [0, 0], sizes = [8, 256], strides = [1, 1]} : vector<8x384xf32> to vector<8x256xf32>
    %12 = arith.addf %10, %11 : vector<8x256xf32>
    %13 = arith.negf %12 : vector<8x256xf32>
    %14 = math.exp %13 : vector<8x256xf32>
    %cst_9 = arith.constant 1.000000e+00 : f32
    %15 = vector.broadcast %cst_9 : f32 to vector<8x256xf32>
    %16 = arith.addf %15, %14 : vector<8x256xf32>
    %17 = arith.divf %15, %16 : vector<8x256xf32>
    %18 = vector.extract_strided_slice %17 {offsets = [0, 0], sizes = [8, 128], strides = [1, 1]} : vector<8x256xf32> to vector<8x128xf32>
    %19 = vector.extract_strided_slice %17 {offsets = [0, 128], sizes = [8, 128], strides = [1, 1]} : vector<8x256xf32> to vector<8x128xf32>
    %20 = vector.extract_strided_slice %8 {offsets = [0, 256], sizes = [8, 128], strides = [1, 1]} : vector<8x384xf32> to vector<8x128xf32>
    %21 = vector.extract_strided_slice %9 {offsets = [0, 256], sizes = [8, 128], strides = [1, 1]} : vector<8x384xf32> to vector<8x128xf32>
    %22 = vector.broadcast %4 : vector<1x128xf32> to vector<8x128xf32>
    %23 = arith.addf %21, %22 : vector<8x128xf32>
    %24 = arith.mulf %18, %23 : vector<8x128xf32>
    %25 = arith.addf %20, %24 : vector<8x128xf32>
    %26 = math.tanh %25 : vector<8x128xf32>
    %cst_10 = arith.constant 1.000000e+00 : f32
    %27 = vector.broadcast %cst_10 : f32 to vector<8x128xf32>
    %28 = arith.subf %27, %19 : vector<8x128xf32>
    %29 = arith.mulf %28, %26 : vector<8x128xf32>
    %30 = arith.mulf %19, %5 : vector<8x128xf32>
    %31 = arith.addf %29, %30 : vector<8x128xf32>
    %c8_i32 = arith.constant 8 : i32
    %32 = arith.muli %arg0, %c8_i32 : i32
    %33 = arith.addi %32, %c0_i32_6 : i32
    %c8_i32_11 = arith.constant 8 : i32
    %34 = arith.cmpi slt, %33, %c8_i32_11 : i32
    %35 = arith.select %34, %31, %5 : vector<8x128xf32>
    %c1_i32 = arith.constant 1 : i32
    %36 = arith.index_cast %c1_i32 : i32 to index
    %c0_12 = arith.constant 0 : index
    %c0_13 = arith.constant 0 : index
    %37 = vector.load %arg1[%36, %c0_12, %c0_13] : memref<8x8x384xf32, #tpu.memory_space<vmem>>, vector<1x8x384xf32>
    %38 = vector.shape_cast %37 : vector<1x8x384xf32> to vector<8x384xf32>
    %cst_14 = arith.constant dense<0.000000e+00> : vector<8x384xf32>
    %39 = tpu.matmul %35, %3, %cst_14 {dimension_numbers = #tpu.dot_dimension_numbers<[1], [0], [0], [1], [0, 0, 1, 1], [], []>} : vector<8x128xf32>, vector<128x384xf32>, vector<8x384xf32> -> vector<8x384xf32>
    %40 = vector.extract_strided_slice %38 {offsets = [0, 0], sizes = [8, 256], strides = [1, 1]} : vector<8x384xf32> to vector<8x256xf32>
    %41 = vector.extract_strided_slice %39 {offsets = [0, 0], sizes = [8, 256], strides = [1, 1]} : vector<8x384xf32> to vector<8x256xf32>
    %42 = arith.addf %40, %41 : vector<8x256xf32>
    %43 = arith.negf %42 : vector<8x256xf32>
    %44 = math.exp %43 : vector<8x256xf32>
    %cst_15 = arith.constant 1.000000e+00 : f32
    %45 = vector.broadcast %cst_15 : f32 to vector<8x256xf32>
    %46 = arith.addf %45, %44 : vector<8x256xf32>
    %47 = arith.divf %45, %46 : vector<8x256xf32>
    %48 = vector.extract_strided_slice %47 {offsets = [0, 0], sizes = [8, 128], strides = [1, 1]} : vector<8x256xf32> to vector<8x128xf32>
    %49 = vector.extract_strided_slice %47 {offsets = [0, 128], sizes = [8, 128], strides = [1, 1]} : vector<8x256xf32> to vector<8x128xf32>
    %50 = vector.extract_strided_slice %38 {offsets = [0, 256], sizes = [8, 128], strides = [1, 1]} : vector<8x384xf32> to vector<8x128xf32>
    %51 = vector.extract_strided_slice %39 {offsets = [0, 256], sizes = [8, 128], strides = [1, 1]} : vector<8x384xf32> to vector<8x128xf32>
    %52 = vector.broadcast %4 : vector<1x128xf32> to vector<8x128xf32>
    %53 = arith.addf %51, %52 : vector<8x128xf32>
    %54 = arith.mulf %48, %53 : vector<8x128xf32>
    %55 = arith.addf %50, %54 : vector<8x128xf32>
    %56 = math.tanh %55 : vector<8x128xf32>
    %cst_16 = arith.constant 1.000000e+00 : f32
    %57 = vector.broadcast %cst_16 : f32 to vector<8x128xf32>
    %58 = arith.subf %57, %49 : vector<8x128xf32>
    %59 = arith.mulf %58, %56 : vector<8x128xf32>
    %60 = arith.mulf %49, %35 : vector<8x128xf32>
    %61 = arith.addf %59, %60 : vector<8x128xf32>
    %c8_i32_17 = arith.constant 8 : i32
    %62 = arith.muli %arg0, %c8_i32_17 : i32
    %63 = arith.addi %62, %c1_i32 : i32
    %c8_i32_18 = arith.constant 8 : i32
    %64 = arith.cmpi slt, %63, %c8_i32_18 : i32
    %65 = arith.select %64, %61, %35 : vector<8x128xf32>
    %c2_i32 = arith.constant 2 : i32
    %66 = arith.index_cast %c2_i32 : i32 to index
    %c0_19 = arith.constant 0 : index
    %c0_20 = arith.constant 0 : index
    %67 = vector.load %arg1[%66, %c0_19, %c0_20] : memref<8x8x384xf32, #tpu.memory_space<vmem>>, vector<1x8x384xf32>
    %68 = vector.shape_cast %67 : vector<1x8x384xf32> to vector<8x384xf32>
    %cst_21 = arith.constant dense<0.000000e+00> : vector<8x384xf32>
    %69 = tpu.matmul %65, %3, %cst_21 {dimension_numbers = #tpu.dot_dimension_numbers<[1], [0], [0], [1], [0, 0, 1, 1], [], []>} : vector<8x128xf32>, vector<128x384xf32>, vector<8x384xf32> -> vector<8x384xf32>
    %70 = vector.extract_strided_slice %68 {offsets = [0, 0], sizes = [8, 256], strides = [1, 1]} : vector<8x384xf32> to vector<8x256xf32>
    %71 = vector.extract_strided_slice %69 {offsets = [0, 0], sizes = [8, 256], strides = [1, 1]} : vector<8x384xf32> to vector<8x256xf32>
    %72 = arith.addf %70, %71 : vector<8x256xf32>
    %73 = arith.negf %72 : vector<8x256xf32>
    %74 = math.exp %73 : vector<8x256xf32>
    %cst_22 = arith.constant 1.000000e+00 : f32
    %75 = vector.broadcast %cst_22 : f32 to vector<8x256xf32>
    %76 = arith.addf %75, %74 : vector<8x256xf32>
    %77 = arith.divf %75, %76 : vector<8x256xf32>
    %78 = vector.extract_strided_slice %77 {offsets = [0, 0], sizes = [8, 128], strides = [1, 1]} : vector<8x256xf32> to vector<8x128xf32>
    %79 = vector.extract_strided_slice %77 {offsets = [0, 128], sizes = [8, 128], strides = [1, 1]} : vector<8x256xf32> to vector<8x128xf32>
    %80 = vector.extract_strided_slice %68 {offsets = [0, 256], sizes = [8, 128], strides = [1, 1]} : vector<8x384xf32> to vector<8x128xf32>
    %81 = vector.extract_strided_slice %69 {offsets = [0, 256], sizes = [8, 128], strides = [1, 1]} : vector<8x384xf32> to vector<8x128xf32>
    %82 = vector.broadcast %4 : vector<1x128xf32> to vector<8x128xf32>
    %83 = arith.addf %81, %82 : vector<8x128xf32>
    %84 = arith.mulf %78, %83 : vector<8x128xf32>
    %85 = arith.addf %80, %84 : vector<8x128xf32>
    %86 = math.tanh %85 : vector<8x128xf32>
    %cst_23 = arith.constant 1.000000e+00 : f32
    %87 = vector.broadcast %cst_23 : f32 to vector<8x128xf32>
    %88 = arith.subf %87, %79 : vector<8x128xf32>
    %89 = arith.mulf %88, %86 : vector<8x128xf32>
    %90 = arith.mulf %79, %65 : vector<8x128xf32>
    %91 = arith.addf %89, %90 : vector<8x128xf32>
    %c8_i32_24 = arith.constant 8 : i32
    %92 = arith.muli %arg0, %c8_i32_24 : i32
    %93 = arith.addi %92, %c2_i32 : i32
    %c8_i32_25 = arith.constant 8 : i32
    %94 = arith.cmpi slt, %93, %c8_i32_25 : i32
    %95 = arith.select %94, %91, %65 : vector<8x128xf32>
    %c3_i32 = arith.constant 3 : i32
    %96 = arith.index_cast %c3_i32 : i32 to index
    %c0_26 = arith.constant 0 : index
    %c0_27 = arith.constant 0 : index
    %97 = vector.load %arg1[%96, %c0_26, %c0_27] : memref<8x8x384xf32, #tpu.memory_space<vmem>>, vector<1x8x384xf32>
    %98 = vector.shape_cast %97 : vector<1x8x384xf32> to vector<8x384xf32>
    %cst_28 = arith.constant dense<0.000000e+00> : vector<8x384xf32>
    %99 = tpu.matmul %95, %3, %cst_28 {dimension_numbers = #tpu.dot_dimension_numbers<[1], [0], [0], [1], [0, 0, 1, 1], [], []>} : vector<8x128xf32>, vector<128x384xf32>, vector<8x384xf32> -> vector<8x384xf32>
    %100 = vector.extract_strided_slice %98 {offsets = [0, 0], sizes = [8, 256], strides = [1, 1]} : vector<8x384xf32> to vector<8x256xf32>
    %101 = vector.extract_strided_slice %99 {offsets = [0, 0], sizes = [8, 256], strides = [1, 1]} : vector<8x384xf32> to vector<8x256xf32>
    %102 = arith.addf %100, %101 : vector<8x256xf32>
    %103 = arith.negf %102 : vector<8x256xf32>
    %104 = math.exp %103 : vector<8x256xf32>
    %cst_29 = arith.constant 1.000000e+00 : f32
    %105 = vector.broadcast %cst_29 : f32 to vector<8x256xf32>
    %106 = arith.addf %105, %104 : vector<8x256xf32>
    %107 = arith.divf %105, %106 : vector<8x256xf32>
    %108 = vector.extract_strided_slice %107 {offsets = [0, 0], sizes = [8, 128], strides = [1, 1]} : vector<8x256xf32> to vector<8x128xf32>
    %109 = vector.extract_strided_slice %107 {offsets = [0, 128], sizes = [8, 128], strides = [1, 1]} : vector<8x256xf32> to vector<8x128xf32>
    %110 = vector.extract_strided_slice %98 {offsets = [0, 256], sizes = [8, 128], strides = [1, 1]} : vector<8x384xf32> to vector<8x128xf32>
    %111 = vector.extract_strided_slice %99 {offsets = [0, 256], sizes = [8, 128], strides = [1, 1]} : vector<8x384xf32> to vector<8x128xf32>
    %112 = vector.broadcast %4 : vector<1x128xf32> to vector<8x128xf32>
    %113 = arith.addf %111, %112 : vector<8x128xf32>
    %114 = arith.mulf %108, %113 : vector<8x128xf32>
    %115 = arith.addf %110, %114 : vector<8x128xf32>
    %116 = math.tanh %115 : vector<8x128xf32>
    %cst_30 = arith.constant 1.000000e+00 : f32
    %117 = vector.broadcast %cst_30 : f32 to vector<8x128xf32>
    %118 = arith.subf %117, %109 : vector<8x128xf32>
    %119 = arith.mulf %118, %116 : vector<8x128xf32>
    %120 = arith.mulf %109, %95 : vector<8x128xf32>
    %121 = arith.addf %119, %120 : vector<8x128xf32>
    %c8_i32_31 = arith.constant 8 : i32
    %122 = arith.muli %arg0, %c8_i32_31 : i32
    %123 = arith.addi %122, %c3_i32 : i32
    %c8_i32_32 = arith.constant 8 : i32
    %124 = arith.cmpi slt, %123, %c8_i32_32 : i32
    %125 = arith.select %124, %121, %95 : vector<8x128xf32>
    %c4_i32 = arith.constant 4 : i32
    %126 = arith.index_cast %c4_i32 : i32 to index
    %c0_33 = arith.constant 0 : index
    %c0_34 = arith.constant 0 : index
    %127 = vector.load %arg1[%126, %c0_33, %c0_34] : memref<8x8x384xf32, #tpu.memory_space<vmem>>, vector<1x8x384xf32>
    %128 = vector.shape_cast %127 : vector<1x8x384xf32> to vector<8x384xf32>
    %cst_35 = arith.constant dense<0.000000e+00> : vector<8x384xf32>
    %129 = tpu.matmul %125, %3, %cst_35 {dimension_numbers = #tpu.dot_dimension_numbers<[1], [0], [0], [1], [0, 0, 1, 1], [], []>} : vector<8x128xf32>, vector<128x384xf32>, vector<8x384xf32> -> vector<8x384xf32>
    %130 = vector.extract_strided_slice %128 {offsets = [0, 0], sizes = [8, 256], strides = [1, 1]} : vector<8x384xf32> to vector<8x256xf32>
    %131 = vector.extract_strided_slice %129 {offsets = [0, 0], sizes = [8, 256], strides = [1, 1]} : vector<8x384xf32> to vector<8x256xf32>
    %132 = arith.addf %130, %131 : vector<8x256xf32>
    %133 = arith.negf %132 : vector<8x256xf32>
    %134 = math.exp %133 : vector<8x256xf32>
    %cst_36 = arith.constant 1.000000e+00 : f32
    %135 = vector.broadcast %cst_36 : f32 to vector<8x256xf32>
    %136 = arith.addf %135, %134 : vector<8x256xf32>
    %137 = arith.divf %135, %136 : vector<8x256xf32>
    %138 = vector.extract_strided_slice %137 {offsets = [0, 0], sizes = [8, 128], strides = [1, 1]} : vector<8x256xf32> to vector<8x128xf32>
    %139 = vector.extract_strided_slice %137 {offsets = [0, 128], sizes = [8, 128], strides = [1, 1]} : vector<8x256xf32> to vector<8x128xf32>
    %140 = vector.extract_strided_slice %128 {offsets = [0, 256], sizes = [8, 128], strides = [1, 1]} : vector<8x384xf32> to vector<8x128xf32>
    %141 = vector.extract_strided_slice %129 {offsets = [0, 256], sizes = [8, 128], strides = [1, 1]} : vector<8x384xf32> to vector<8x128xf32>
    %142 = vector.broadcast %4 : vector<1x128xf32> to vector<8x128xf32>
    %143 = arith.addf %141, %142 : vector<8x128xf32>
    %144 = arith.mulf %138, %143 : vector<8x128xf32>
    %145 = arith.addf %140, %144 : vector<8x128xf32>
    %146 = math.tanh %145 : vector<8x128xf32>
    %cst_37 = arith.constant 1.000000e+00 : f32
    %147 = vector.broadcast %cst_37 : f32 to vector<8x128xf32>
    %148 = arith.subf %147, %139 : vector<8x128xf32>
    %149 = arith.mulf %148, %146 : vector<8x128xf32>
    %150 = arith.mulf %139, %125 : vector<8x128xf32>
    %151 = arith.addf %149, %150 : vector<8x128xf32>
    %c8_i32_38 = arith.constant 8 : i32
    %152 = arith.muli %arg0, %c8_i32_38 : i32
    %153 = arith.addi %152, %c4_i32 : i32
    %c8_i32_39 = arith.constant 8 : i32
    %154 = arith.cmpi slt, %153, %c8_i32_39 : i32
    %155 = arith.select %154, %151, %125 : vector<8x128xf32>
    %c5_i32 = arith.constant 5 : i32
    %156 = arith.index_cast %c5_i32 : i32 to index
    %c0_40 = arith.constant 0 : index
    %c0_41 = arith.constant 0 : index
    %157 = vector.load %arg1[%156, %c0_40, %c0_41] : memref<8x8x384xf32, #tpu.memory_space<vmem>>, vector<1x8x384xf32>
    %158 = vector.shape_cast %157 : vector<1x8x384xf32> to vector<8x384xf32>
    %cst_42 = arith.constant dense<0.000000e+00> : vector<8x384xf32>
    %159 = tpu.matmul %155, %3, %cst_42 {dimension_numbers = #tpu.dot_dimension_numbers<[1], [0], [0], [1], [0, 0, 1, 1], [], []>} : vector<8x128xf32>, vector<128x384xf32>, vector<8x384xf32> -> vector<8x384xf32>
    %160 = vector.extract_strided_slice %158 {offsets = [0, 0], sizes = [8, 256], strides = [1, 1]} : vector<8x384xf32> to vector<8x256xf32>
    %161 = vector.extract_strided_slice %159 {offsets = [0, 0], sizes = [8, 256], strides = [1, 1]} : vector<8x384xf32> to vector<8x256xf32>
    %162 = arith.addf %160, %161 : vector<8x256xf32>
    %163 = arith.negf %162 : vector<8x256xf32>
    %164 = math.exp %163 : vector<8x256xf32>
    %cst_43 = arith.constant 1.000000e+00 : f32
    %165 = vector.broadcast %cst_43 : f32 to vector<8x256xf32>
    %166 = arith.addf %165, %164 : vector<8x256xf32>
    %167 = arith.divf %165, %166 : vector<8x256xf32>
    %168 = vector.extract_strided_slice %167 {offsets = [0, 0], sizes = [8, 128], strides = [1, 1]} : vector<8x256xf32> to vector<8x128xf32>
    %169 = vector.extract_strided_slice %167 {offsets = [0, 128], sizes = [8, 128], strides = [1, 1]} : vector<8x256xf32> to vector<8x128xf32>
    %170 = vector.extract_strided_slice %158 {offsets = [0, 256], sizes = [8, 128], strides = [1, 1]} : vector<8x384xf32> to vector<8x128xf32>
    %171 = vector.extract_strided_slice %159 {offsets = [0, 256], sizes = [8, 128], strides = [1, 1]} : vector<8x384xf32> to vector<8x128xf32>
    %172 = vector.broadcast %4 : vector<1x128xf32> to vector<8x128xf32>
    %173 = arith.addf %171, %172 : vector<8x128xf32>
    %174 = arith.mulf %168, %173 : vector<8x128xf32>
    %175 = arith.addf %170, %174 : vector<8x128xf32>
    %176 = math.tanh %175 : vector<8x128xf32>
    %cst_44 = arith.constant 1.000000e+00 : f32
    %177 = vector.broadcast %cst_44 : f32 to vector<8x128xf32>
    %178 = arith.subf %177, %169 : vector<8x128xf32>
    %179 = arith.mulf %178, %176 : vector<8x128xf32>
    %180 = arith.mulf %169, %155 : vector<8x128xf32>
    %181 = arith.addf %179, %180 : vector<8x128xf32>
    %c8_i32_45 = arith.constant 8 : i32
    %182 = arith.muli %arg0, %c8_i32_45 : i32
    %183 = arith.addi %182, %c5_i32 : i32
    %c8_i32_46 = arith.constant 8 : i32
    %184 = arith.cmpi slt, %183, %c8_i32_46 : i32
    %185 = arith.select %184, %181, %155 : vector<8x128xf32>
    %c6_i32 = arith.constant 6 : i32
    %186 = arith.index_cast %c6_i32 : i32 to index
    %c0_47 = arith.constant 0 : index
    %c0_48 = arith.constant 0 : index
    %187 = vector.load %arg1[%186, %c0_47, %c0_48] : memref<8x8x384xf32, #tpu.memory_space<vmem>>, vector<1x8x384xf32>
    %188 = vector.shape_cast %187 : vector<1x8x384xf32> to vector<8x384xf32>
    %cst_49 = arith.constant dense<0.000000e+00> : vector<8x384xf32>
    %189 = tpu.matmul %185, %3, %cst_49 {dimension_numbers = #tpu.dot_dimension_numbers<[1], [0], [0], [1], [0, 0, 1, 1], [], []>} : vector<8x128xf32>, vector<128x384xf32>, vector<8x384xf32> -> vector<8x384xf32>
    %190 = vector.extract_strided_slice %188 {offsets = [0, 0], sizes = [8, 256], strides = [1, 1]} : vector<8x384xf32> to vector<8x256xf32>
    %191 = vector.extract_strided_slice %189 {offsets = [0, 0], sizes = [8, 256], strides = [1, 1]} : vector<8x384xf32> to vector<8x256xf32>
    %192 = arith.addf %190, %191 : vector<8x256xf32>
    %193 = arith.negf %192 : vector<8x256xf32>
    %194 = math.exp %193 : vector<8x256xf32>
    %cst_50 = arith.constant 1.000000e+00 : f32
    %195 = vector.broadcast %cst_50 : f32 to vector<8x256xf32>
    %196 = arith.addf %195, %194 : vector<8x256xf32>
    %197 = arith.divf %195, %196 : vector<8x256xf32>
    %198 = vector.extract_strided_slice %197 {offsets = [0, 0], sizes = [8, 128], strides = [1, 1]} : vector<8x256xf32> to vector<8x128xf32>
    %199 = vector.extract_strided_slice %197 {offsets = [0, 128], sizes = [8, 128], strides = [1, 1]} : vector<8x256xf32> to vector<8x128xf32>
    %200 = vector.extract_strided_slice %188 {offsets = [0, 256], sizes = [8, 128], strides = [1, 1]} : vector<8x384xf32> to vector<8x128xf32>
    %201 = vector.extract_strided_slice %189 {offsets = [0, 256], sizes = [8, 128], strides = [1, 1]} : vector<8x384xf32> to vector<8x128xf32>
    %202 = vector.broadcast %4 : vector<1x128xf32> to vector<8x128xf32>
    %203 = arith.addf %201, %202 : vector<8x128xf32>
    %204 = arith.mulf %198, %203 : vector<8x128xf32>
    %205 = arith.addf %200, %204 : vector<8x128xf32>
    %206 = math.tanh %205 : vector<8x128xf32>
    %cst_51 = arith.constant 1.000000e+00 : f32
    %207 = vector.broadcast %cst_51 : f32 to vector<8x128xf32>
    %208 = arith.subf %207, %199 : vector<8x128xf32>
    %209 = arith.mulf %208, %206 : vector<8x128xf32>
    %210 = arith.mulf %199, %185 : vector<8x128xf32>
    %211 = arith.addf %209, %210 : vector<8x128xf32>
    %c8_i32_52 = arith.constant 8 : i32
    %212 = arith.muli %arg0, %c8_i32_52 : i32
    %213 = arith.addi %212, %c6_i32 : i32
    %c8_i32_53 = arith.constant 8 : i32
    %214 = arith.cmpi slt, %213, %c8_i32_53 : i32
    %215 = arith.select %214, %211, %185 : vector<8x128xf32>
    %c7_i32 = arith.constant 7 : i32
    %216 = arith.index_cast %c7_i32 : i32 to index
    %c0_54 = arith.constant 0 : index
    %c0_55 = arith.constant 0 : index
    %217 = vector.load %arg1[%216, %c0_54, %c0_55] : memref<8x8x384xf32, #tpu.memory_space<vmem>>, vector<1x8x384xf32>
    %218 = vector.shape_cast %217 : vector<1x8x384xf32> to vector<8x384xf32>
    %cst_56 = arith.constant dense<0.000000e+00> : vector<8x384xf32>
    %219 = tpu.matmul %215, %3, %cst_56 {dimension_numbers = #tpu.dot_dimension_numbers<[1], [0], [0], [1], [0, 0, 1, 1], [], []>} : vector<8x128xf32>, vector<128x384xf32>, vector<8x384xf32> -> vector<8x384xf32>
    %220 = vector.extract_strided_slice %218 {offsets = [0, 0], sizes = [8, 256], strides = [1, 1]} : vector<8x384xf32> to vector<8x256xf32>
    %221 = vector.extract_strided_slice %219 {offsets = [0, 0], sizes = [8, 256], strides = [1, 1]} : vector<8x384xf32> to vector<8x256xf32>
    %222 = arith.addf %220, %221 : vector<8x256xf32>
    %223 = arith.negf %222 : vector<8x256xf32>
    %224 = math.exp %223 : vector<8x256xf32>
    %cst_57 = arith.constant 1.000000e+00 : f32
    %225 = vector.broadcast %cst_57 : f32 to vector<8x256xf32>
    %226 = arith.addf %225, %224 : vector<8x256xf32>
    %227 = arith.divf %225, %226 : vector<8x256xf32>
    %228 = vector.extract_strided_slice %227 {offsets = [0, 0], sizes = [8, 128], strides = [1, 1]} : vector<8x256xf32> to vector<8x128xf32>
    %229 = vector.extract_strided_slice %227 {offsets = [0, 128], sizes = [8, 128], strides = [1, 1]} : vector<8x256xf32> to vector<8x128xf32>
    %230 = vector.extract_strided_slice %218 {offsets = [0, 256], sizes = [8, 128], strides = [1, 1]} : vector<8x384xf32> to vector<8x128xf32>
    %231 = vector.extract_strided_slice %219 {offsets = [0, 256], sizes = [8, 128], strides = [1, 1]} : vector<8x384xf32> to vector<8x128xf32>
    %232 = vector.broadcast %4 : vector<1x128xf32> to vector<8x128xf32>
    %233 = arith.addf %231, %232 : vector<8x128xf32>
    %234 = arith.mulf %228, %233 : vector<8x128xf32>
    %235 = arith.addf %230, %234 : vector<8x128xf32>
    %236 = math.tanh %235 : vector<8x128xf32>
    %cst_58 = arith.constant 1.000000e+00 : f32
    %237 = vector.broadcast %cst_58 : f32 to vector<8x128xf32>
    %238 = arith.subf %237, %229 : vector<8x128xf32>
    %239 = arith.mulf %238, %236 : vector<8x128xf32>
    %240 = arith.mulf %229, %215 : vector<8x128xf32>
    %241 = arith.addf %239, %240 : vector<8x128xf32>
    %c8_i32_59 = arith.constant 8 : i32
    %242 = arith.muli %arg0, %c8_i32_59 : i32
    %243 = arith.addi %242, %c7_i32 : i32
    %c8_i32_60 = arith.constant 8 : i32
    %244 = arith.cmpi slt, %243, %c8_i32_60 : i32
    %245 = arith.select %244, %241, %215 : vector<8x128xf32>
    %c8_i32_61 = arith.constant 8 : i32
    %c0_62 = arith.constant 0 : index
    %c0_63 = arith.constant 0 : index
    %246 = vector.load %arg4[%c0_62, %c0_63] : memref<8x128xf32, #tpu.memory_space<vmem>>, vector<8x128xf32>
    tpu.vector_store %arg4[%c0_62, %c0_63], %245 {strides = array<i32>} : memref<8x128xf32, #tpu.memory_space<vmem>>, vector<8x128xf32>,
    return
  }
  func.func @transform_0(%arg0: i32) -> (i32, i32, i32) {
    %c0_i32 = arith.constant 0 : i32
    %c0_i32_0 = arith.constant 0 : i32
    %c0_i32_1 = arith.constant 0 : i32
    return %arg0, %c0_i32, %c0_i32_0 : i32, i32, i32
  }
  func.func @transform_1(%arg0: i32) -> (i32, i32) {
    %c0_i32 = arith.constant 0 : i32
    %c0_i32_0 = arith.constant 0 : i32
    %c0_i32_1 = arith.constant 0 : i32
    return %c0_i32, %c0_i32_0 : i32, i32
  }
  func.func @transform_2(%arg0: i32) -> (i32, i32) {
    %c0_i32 = arith.constant 0 : i32
    %c0_i32_0 = arith.constant 0 : i32
    %c0_i32_1 = arith.constant 0 : i32
    return %c0_i32, %c0_i32_0 : i32, i32
  }
  func.func @transform_3(%arg0: i32) -> (i32, i32) {
    %c0_i32 = arith.constant 0 : i32
    %c0_i32_0 = arith.constant 0 : i32
    %c0_i32_1 = arith.constant 0 : i32
    return %c0_i32, %c0_i32_0 : i32, i32
  }
}

</mosaic_0001>

<llo_original>
// kernel: recurrent_encoder.2
$region0: #{recurrent_encoder.2}
  #allocation0 [shape = 'u32[]', space=smem, size = 0x4, offset = 0x4, fixed_abs, tag = 'smem constant byte address 0x4 - core index']
  #allocation1 [shape = 'u32[144,128]{1,0:T(1,128)}', space=vmem, size = 0x12000, scoped, tag = 'internal scratch']
  %s0 = inlined_call_operand.vmem [shape: f32[64,4], index: 0, kind: input, shape index: {}]
  %s1 = inlined_call_operand.vmem [shape: f32[4,384], index: 1, kind: input, shape index: {}]
  %s2 = inlined_call_operand.vmem [shape: f32[1,384], index: 2, kind: input, shape index: {}]
  %s3 = inlined_call_operand.vmem [shape: f32[64,384], index: 3, kind: output, shape index: {}]
  %s4 = sld [smem:[#allocation0]]
  $region22: #{recurrent_encoder.2} parent=0
    _
  %s6 = ssub.s32 1, %s4
  %s7 = scalar_select 0, %s6, %s4
  // Predicated region
  $region2: #{recurrent_encoder.2} parent=0 // pred_check
    _
  $region3: #{recurrent_encoder.2} parent=0 // pred_check_branch
    %9 = sbr.rel (0) target = $region5
  $region4: #{recurrent_encoder.2} parent=0 // pred_region
    _
  $region5: #{recurrent_encoder.2} parent=0 // pred_fallthru
    _
  // Predicated region
  $region6: #{recurrent_encoder.2} parent=0 // pred_check
    _
  $region7: #{recurrent_encoder.2} parent=0 // pred_check_branch
    %11 = sbr.rel (0) target = $region9
  $region8: #{recurrent_encoder.2} parent=0 // pred_region
    _
  $region9: #{recurrent_encoder.2} parent=0 // pred_fallthru
    _
  // Predicated region
  $region10: #{recurrent_encoder.2} parent=0 // pred_check
    _
  $region11: #{recurrent_encoder.2} parent=0 // pred_check_branch
    %13 = sbr.rel (0) target = $region13
  $region12: #{recurrent_encoder.2} parent=0 // pred_region
    _
  $region13: #{recurrent_encoder.2} parent=0 // pred_fallthru
    _
  %v14 = vld [vmem:[%s0] sm:$0xff]
  %v15 = vld [vmem:[%s0 + $0x8] sm:$0xff]
  %v16 = vld [vmem:[%s0 + $0x10] sm:$0xff]
  %v17 = vld [vmem:[%s0 + $0x18] sm:$0xff]
  %v18 = vld [vmem:[%s0 + $0x20] sm:$0xff]
  %v19 = vld [vmem:[%s0 + $0x28] sm:$0xff]
  %v20 = vld [vmem:[%s0 + $0x30] sm:$0xff]
  %v21 = vld [vmem:[%s0 + $0x38] sm:$0xff]
  %v22 = vld [vmem:[%s1] sm:$0xff]
  %v23 = vld [vmem:[%s1 + $0x8] sm:$0xf]
  %v24 = vld [vmem:[%s2] sm:$0x7]
  %v26 = vlaneseq
  %v27 = vshrl.u32 %v26, 7
  %v28 = vsub.s32 0, %v27
  %v29 = vrot.slane %v24, %v28
  %v30 = vlaneseq
  %v31 = vshrl.u32 %v30, 7
  %v32 = vsub.s32 1, %v31
  %v33 = vrot.slane %v24, %v32
  %v34 = vlaneseq
  %v35 = vshrl.u32 %v34, 7
  %v36 = vsub.s32 2, %v35
  %v37 = vrot.slane %v24, %v36
  %v43 = vcombine.high %v22, %v22
  %vm44 = vcmask 31744
  %v46 = vsel %vm44, %v14, 0
  %v49 = vsel %vm44, %v15, 0
  %v52 = vsel %vm44, %v16, 0
  %v55 = vsel %vm44, %v17, 0
  %v58 = vsel %vm44, %v18, 0
  %v61 = vsel %vm44, %v19, 0
  %v64 = vsel %vm44, %v20, 0
  %v67 = vsel %vm44, %v21, 0
  %vm69 = vcmask 1043456
  %v70 = vsel %vm69, %v22, 0
  %v72 = vsel %vm69, %v43, 0
  %v74 = vsel %vm69, %v23, 0
  %76 = vmatprep.subr.mxu0 %v72
  %77 = vmatpush1.msra.mxu0 %v70
  %78 = vmatprep.subr.mxu0 0.0
  %79 = vmatpush1.msra.mxu0 0.0
  %80 = vmatprep.subr.mxu0 0.0
  %81 = vmatpush1.msra.mxu0 0.0
  %82 = vmatprep.subr.mxu0 0.0
  %83 = vmatpush1.msra.mxu0 0.0
  %84 = vmatprep.subr.mxu0 0.0
  %85 = vmatpush1.msra.mxu0 0.0
  %86 = vmatprep.subr.mxu0 0.0
  %87 = vmatpush1.msra.mxu0 0.0
  %88 = vmatprep.subr.mxu0 0.0
  %89 = vmatpush1.msra.mxu0 0.0
  %90 = vmatprep.subr.mxu0 0.0
  %91 = vmatpush1.msra.mxu0 0.0
  %92 = vmatprep.subr.mxu0 0.0
  %93 = vmatpush1.msra.mxu0 0.0
  %94 = vmatprep.subr.mxu0 0.0
  %95 = vmatpush1.msra.mxu0 0.0
  %96 = vmatprep.subr.mxu0 0.0
  %97 = vmatpush1.msra.mxu0 0.0
  %98 = vmatprep.subr.mxu0 0.0
  %99 = vmatpush1.msra.mxu0 0.0
  %100 = vmatprep.subr.mxu0 0.0
  %101 = vmatpush1.msra.mxu0 0.0
  %102 = vmatprep.subr.mxu0 0.0
  %103 = vmatpush1.msra.mxu0 0.0
  %104 = vmatprep.subr.mxu0 0.0
  %105 = vmatpush1.msra.mxu0 0.0
  %106 = vmatprep.subr.mxu0 0.0
  %107 = vmatpush1.msra.mxu0 0.0
  %108 = vmatprep.subr.mxu0 0.0
  %109 = vmatpush1.msra.mxu0 0.0
  %110 = vmatprep.subr.mxu0 0.0
  %111 = vmatpush1.msra.mxu0 0.0
  %112 = vmatprep.subr.mxu0 0.0
  %113 = vmatpush1.msra.mxu0 0.0
  %114 = vmatprep.subr.mxu0 0.0
  %115 = vmatpush1.msra.mxu0 0.0
  %116 = vmatprep.subr.mxu0 0.0
  %117 = vmatpush1.msra.mxu0 0.0
  %118 = vmatprep.subr.mxu0 0.0
  %119 = vmatpush1.msra.mxu0 0.0
  %120 = vmatprep.subr.mxu0 0.0
  %121 = vmatpush1.msra.mxu0 0.0
  %122 = vmatprep.subr.mxu0 0.0
  %123 = vmatpush1.msra.mxu0 0.0
  %124 = vmatprep.subr.mxu0 0.0
  %125 = vmatpush1.msra.mxu0 0.0
  %126 = vmatprep.subr.mxu0 0.0
  %127 = vmatpush1.msra.mxu0 0.0
  %128 = vmatprep.subr.mxu0 0.0
  %129 = vmatpush1.msra.mxu0 0.0
  %130 = vmatprep.subr.mxu0 0.0
  %131 = vmatpush1.msra.mxu0 0.0
  %132 = vmatprep.subr.mxu0 0.0
  %133 = vmatpush1.msra.mxu0 0.0
  %134 = vmatprep.subr.mxu0 0.0
  %135 = vmatpush1.msra.mxu0 0.0
  %136 = vmatprep.subr.mxu0 0.0
  %137 = vmatpush1.msra.mxu0 0.0
  %138 = vmatprep.subr.mxu0 0.0
  %139 = vmatpush1.msra.mxu0 0.0
  %140 = vmatprep.mubr.f32.mxu0 0.0
  %141 = vmatmul.mubr.f32.gmra.mrb[0].mxu0 %v46
  %v142 = vpop.f32.mrb[0].mxu0
  %v143 = vadd.f32 %v29, %v142
  %v144 = vpop.f32.mrb[0].mxu0
  %v145 = vadd.f32 %v33, %v144
  %146 = vmatprep.mubr.f32.mxu0 0.0
  %147 = vmatmul.mubr.f32.gmra.mrb[0].mxu0 %v49
  %v148 = vpop.f32.mrb[0].mxu0
  %v149 = vadd.f32 %v29, %v148
  %v150 = vpop.f32.mrb[0].mxu0
  %v151 = vadd.f32 %v33, %v150
  %152 = vmatprep.mubr.f32.mxu0 0.0
  %153 = vmatmul.mubr.f32.gmra.mrb[0].mxu0 %v52
  %v154 = vpop.f32.mrb[0].mxu0
  %v155 = vadd.f32 %v29, %v154
  %v156 = vpop.f32.mrb[0].mxu0
  %v157 = vadd.f32 %v33, %v156
  %158 = vmatprep.mubr.f32.mxu0 0.0
  %159 = vmatmul.mubr.f32.gmra.mrb[0].mxu0 %v55
  %v160 = vpop.f32.mrb[0].mxu0
  %v161 = vadd.f32 %v29, %v160
  %v162 = vpop.f32.mrb[0].mxu0
  %v163 = vadd.f32 %v33, %v162
  %164 = vmatprep.mubr.f32.mxu0 0.0
  %165 = vmatmul.mubr.f32.gmra.mrb[0].mxu0 %v58
  %v166 = vpop.f32.mrb[0].mxu0
  %v167 = vadd.f32 %v29, %v166
  %v168 = vpop.f32.mrb[0].mxu0
  %v169 = vadd.f32 %v33, %v168
  %170 = vmatprep.mubr.f32.mxu0 0.0
  %171 = vmatmul.mubr.f32.gmra.mrb[0].mxu0 %v61
  %v172 = vpop.f32.mrb[0].mxu0
  %v173 = vadd.f32 %v29, %v172
  %v174 = vpop.f32.mrb[0].mxu0
  %v175 = vadd.f32 %v33, %v174
  %176 = vmatprep.mubr.f32.mxu0 0.0
  %177 = vmatmul.mubr.f32.gmra.mrb[0].mxu0 %v64
  %v178 = vpop.f32.mrb[0].mxu0
  %v179 = vadd.f32 %v29, %v178
  %v180 = vpop.f32.mrb[0].mxu0
  %v181 = vadd.f32 %v33, %v180
  %182 = vmatprep.mubr.f32.mxu0 0.0
  %183 = vmatmul.mubr.f32.gmra.mrb[0].mxu0 %v67
  %v184 = vpop.f32.mrb[0].mxu0
  %v185 = vadd.f32 %v29, %v184
  %v186 = vpop.f32.mrb[0].mxu0
  %v187 = vadd.f32 %v33, %v186
  %188 = vdwg.mxu0
  %189 = vmatprep.subr.mxu0 0.0
  %190 = vmatpush1.msra.mxu0 %v74
  %191 = vmatprep.subr.mxu0 0.0
  %192 = vmatpush1.msra.mxu0 0.0
  %193 = vmatprep.subr.mxu0 0.0
  %194 = vmatpush1.msra.mxu0 0.0
  %195 = vmatprep.subr.mxu0 0.0
  %196 = vmatpush1.msra.mxu0 0.0
  %197 = vmatprep.subr.mxu0 0.0
  %198 = vmatpush1.msra.mxu0 0.0
  %199 = vmatprep.subr.mxu0 0.0
  %200 = vmatpush1.msra.mxu0 0.0
  %201 = vmatprep.subr.mxu0 0.0
  %202 = vmatpush1.msra.mxu0 0.0
  %203 = vmatprep.subr.mxu0 0.0
  %204 = vmatpush1.msra.mxu0 0.0
  %205 = vmatprep.subr.mxu0 0.0
  %206 = vmatpush1.msra.mxu0 0.0
  %207 = vmatprep.subr.mxu0 0.0
  %208 = vmatpush1.msra.mxu0 0.0
  %209 = vmatprep.subr.mxu0 0.0
  %210 = vmatpush1.msra.mxu0 0.0
  %211 = vmatprep.subr.mxu0 0.0
  %212 = vmatpush1.msra.mxu0 0.0
  %213 = vmatprep.subr.mxu0 0.0
  %214 = vmatpush1.msra.mxu0 0.0
  %215 = vmatprep.subr.mxu0 0.0
  %216 = vmatpush1.msra.mxu0 0.0
  %217 = vmatprep.subr.mxu0 0.0
  %218 = vmatpush1.msra.mxu0 0.0
  %219 = vmatprep.subr.mxu0 0.0
  %220 = vmatpush1.msra.mxu0 0.0
  %221 = vmatprep.subr.mxu0 0.0
  %222 = vmatpush1.msra.mxu0 0.0
  %223 = vmatprep.subr.mxu0 0.0
  %224 = vmatpush1.msra.mxu0 0.0
  %225 = vmatprep.subr.mxu0 0.0
  %226 = vmatpush1.msra.mxu0 0.0
  %227 = vmatprep.subr.mxu0 0.0
  %228 = vmatpush1.msra.mxu0 0.0
  %229 = vmatprep.subr.mxu0 0.0
  %230 = vmatpush1.msra.mxu0 0.0
  %231 = vmatprep.subr.mxu0 0.0
  %232 = vmatpush1.msra.mxu0 0.0
  %233 = vmatprep.subr.mxu0 0.0
  %234 = vmatpush1.msra.mxu0 0.0
  %235 = vmatprep.subr.mxu0 0.0
  %236 = vmatpush1.msra.mxu0 0.0
  %237 = vmatprep.subr.mxu0 0.0
  %238 = vmatpush1.msra.mxu0 0.0
  %239 = vmatprep.subr.mxu0 0.0
  %240 = vmatpush1.msra.mxu0 0.0
  %241 = vmatprep.subr.mxu0 0.0
  %242 = vmatpush1.msra.mxu0 0.0
  %243 = vmatprep.subr.mxu0 0.0
  %244 = vmatpush1.msra.mxu0 0.0
  %245 = vmatprep.subr.mxu0 0.0
  %246 = vmatpush1.msra.mxu0 0.0
  %247 = vmatprep.subr.mxu0 0.0
  %248 = vmatpush1.msra.mxu0 0.0
  %249 = vmatprep.subr.mxu0 0.0
  %250 = vmatpush1.msra.mxu0 0.0
  %251 = vmatprep.subr.mxu0 0.0
  %252 = vmatpush1.msra.mxu0 0.0
  %253 = vmatprep.mubr.f32.mxu0 0.0
  %254 = vmatmul.mubr.f32.gmra.mrb[0].mxu0 %v46
  %v255 = vpop.f32.mrb[0].mxu0
  %v256 = vadd.f32 %v37, %v255
  %v257 = vpop.f32.mrb[0].mxu0
  %258 = vmatprep.mubr.f32.mxu0 0.0
  %259 = vmatmul.mubr.f32.gmra.mrb[0].mxu0 %v49
  %v260 = vpop.f32.mrb[0].mxu0
  %v261 = vadd.f32 %v37, %v260
  %v262 = vpop.f32.mrb[0].mxu0
  %263 = vmatprep.mubr.f32.mxu0 0.0
  %264 = vmatmul.mubr.f32.gmra.mrb[0].mxu0 %v52
  %v265 = vpop.f32.mrb[0].mxu0
  %v266 = vadd.f32 %v37, %v265
  %v267 = vpop.f32.mrb[0].mxu0
  %268 = vmatprep.mubr.f32.mxu0 0.0
  %269 = vmatmul.mubr.f32.gmra.mrb[0].mxu0 %v55
  %v270 = vpop.f32.mrb[0].mxu0
  %v271 = vadd.f32 %v37, %v270
  %v272 = vpop.f32.mrb[0].mxu0
  %273 = vmatprep.mubr.f32.mxu0 0.0
  %274 = vmatmul.mubr.f32.gmra.mrb[0].mxu0 %v58
  %v275 = vpop.f32.mrb[0].mxu0
  %v276 = vadd.f32 %v37, %v275
  %v277 = vpop.f32.mrb[0].mxu0
  %278 = vmatprep.mubr.f32.mxu0 0.0
  %279 = vmatmul.mubr.f32.gmra.mrb[0].mxu0 %v61
  %v280 = vpop.f32.mrb[0].mxu0
  %v281 = vadd.f32 %v37, %v280
  %v282 = vpop.f32.mrb[0].mxu0
  %283 = vmatprep.mubr.f32.mxu0 0.0
  %284 = vmatmul.mubr.f32.gmra.mrb[0].mxu0 %v64
  %v285 = vpop.f32.mrb[0].mxu0
  %v286 = vadd.f32 %v37, %v285
  %v287 = vpop.f32.mrb[0].mxu0
  %288 = vmatprep.mubr.f32.mxu0 0.0
  %289 = vmatmul.mubr.f32.gmra.mrb[0].mxu0 %v67
  %v290 = vpop.f32.mrb[0].mxu0
  %v291 = vadd.f32 %v37, %v290
  %v292 = vpop.f32.mrb[0].mxu0
  %293 = vdwg.mxu0
  %294 = vst [vmem:[%s3] sm:$0xff] %v143
  %295 = vst [vmem:[%s3 + $0x8] sm:$0xff] %v145
  %296 = vst [vmem:[%s3 + $0x10] sm:$0xff] %v256
  %297 = vst [vmem:[%s3 + $0x18] sm:$0xff] %v149
  %298 = vst [vmem:[%s3 + $0x20] sm:$0xff] %v151
  %299 = vst [vmem:[%s3 + $0x28] sm:$0xff] %v261
  %300 = vst [vmem:[%s3 + $0x30] sm:$0xff] %v155
  %301 = vst [vmem:[%s3 + $0x38] sm:$0xff] %v157
  %302 = vst [vmem:[%s3 + $0x40] sm:$0xff] %v266
  %303 = vst [vmem:[%s3 + $0x48] sm:$0xff] %v161
  %304 = vst [vmem:[%s3 + $0x50] sm:$0xff] %v163
  %305 = vst [vmem:[%s3 + $0x58] sm:$0xff] %v271
  %306 = vst [vmem:[%s3 + $0x60] sm:$0xff] %v167
  %307 = vst [vmem:[%s3 + $0x68] sm:$0xff] %v169
  %308 = vst [vmem:[%s3 + $0x70] sm:$0xff] %v276
  %309 = vst [vmem:[%s3 + $0x78] sm:$0xff] %v173
  %310 = vst [vmem:[%s3 + $0x80] sm:$0xff] %v175
  %311 = vst [vmem:[%s3 + $0x88] sm:$0xff] %v281
  %312 = vst [vmem:[%s3 + $0x90] sm:$0xff] %v179
  %313 = vst [vmem:[%s3 + $0x98] sm:$0xff] %v181
  %314 = vst [vmem:[%s3 + $0xa0] sm:$0xff] %v286
  %315 = vst [vmem:[%s3 + $0xa8] sm:$0xff] %v185
  %316 = vst [vmem:[%s3 + $0xb0] sm:$0xff] %v187
  %317 = vst [vmem:[%s3 + $0xb8] sm:$0xff] %v291
  // Predicated region
  $region14: #{recurrent_encoder.2} parent=0 // pred_check
    _
  $region15: #{recurrent_encoder.2} parent=0 // pred_check_branch
    %319 = sbr.rel (0) target = $region17
  $region16: #{recurrent_encoder.2} parent=0 // pred_region
    _
  $region17: #{recurrent_encoder.2} parent=0 // pred_fallthru
    _
  // Predicated region
  $region18: #{recurrent_encoder.2} parent=0 // pred_check
    _
  $region19: #{recurrent_encoder.2} parent=0 // pred_check_branch
    %321 = sbr.rel (0) target = $region21
  $region20: #{recurrent_encoder.2} parent=0 // pred_region
    _
  $region21: #{recurrent_encoder.2} parent=0 // pred_fallthru
    _

// kernel: recurrent_encoder.3
$region0: #{recurrent_encoder.3}
  #allocation0 [shape = 'u32[]', space=smem, size = 0x4, offset = 0x4, fixed_abs, tag = 'smem constant byte address 0x4 - core index']
  #allocation1 [shape = 'u32[144,128]{1,0:T(1,128)}', space=vmem, size = 0x12000, scoped, tag = 'internal scratch']
  %s0 = inlined_call_operand.vmem [shape: f32[8,8,384], index: 0, kind: input, shape index: {}]
  %s1 = inlined_call_operand.vmem [shape: f32[128,384], index: 1, kind: input, shape index: {}]
  %s2 = inlined_call_operand.vmem [shape: f32[1,128], index: 2, kind: input, shape index: {}]
  %s3 = inlined_call_operand.vmem [shape: f32[8,128], index: 3, kind: output, shape index: {}]
  %s4 = sld [smem:[#allocation0]]
  $region26: #{recurrent_encoder.3} parent=0
    _
  %s6 = ssub.s32 1, %s4
  %s7 = scalar_select 0, %s6, %s4
  // Predicated region
  $region2: #{recurrent_encoder.3} parent=0 // pred_check
    _
  $region3: #{recurrent_encoder.3} parent=0 // pred_check_branch
    %9 = sbr.rel (0) target = $region5
  $region4: #{recurrent_encoder.3} parent=0 // pred_region
    _
  $region5: #{recurrent_encoder.3} parent=0 // pred_fallthru
    _
  // Predicated region
  $region6: #{recurrent_encoder.3} parent=0 // pred_check
    _
  $region7: #{recurrent_encoder.3} parent=0 // pred_check_branch
    %11 = sbr.rel (0) target = $region9
  $region8: #{recurrent_encoder.3} parent=0 // pred_region
    _
  $region9: #{recurrent_encoder.3} parent=0 // pred_fallthru
    _
  // Predicated region
  $region10: #{recurrent_encoder.3} parent=0 // pred_check
    _
  $region11: #{recurrent_encoder.3} parent=0 // pred_check_branch
    %13 = sbr.rel (0) target = $region13
  $region12: #{recurrent_encoder.3} parent=0 // pred_region
    _
  $region13: #{recurrent_encoder.3} parent=0 // pred_fallthru
    _
  %p14 = scmp.eq.s32.totalorder 0, 0
  // Predicated region
  $region14: #{recurrent_encoder.3} parent=0 // pred_check
    %p15 = pneg %p14
  $region15: #{recurrent_encoder.3} parent=0 // pred_check_branch
    %17 = sbr.rel (%p15) target = $region17
  $region16: #{recurrent_encoder.3} parent=0 // pred_region
    %18 = vst [vmem:[%s3] sm:$0xff] 0.0
  $region17: #{recurrent_encoder.3} parent=0 // pred_fallthru
    _
  %v19 = vld [vmem:[%s1] sm:$0xff]
  %v20 = vld [vmem:[%s1 + $0x8] sm:$0xff]
  %v21 = vld [vmem:[%s1 + $0x10] sm:$0xff]
  %v22 = vld [vmem:[%s1 + $0x18] sm:$0xff]
  %v23 = vld [vmem:[%s1 + $0x20] sm:$0xff]
  %v24 = vld [vmem:[%s1 + $0x28] sm:$0xff]
  %v25 = vld [vmem:[%s1 + $0x30] sm:$0xff]
  %v26 = vld [vmem:[%s1 + $0x38] sm:$0xff]
  %v27 = vld [vmem:[%s1 + $0x40] sm:$0xff]
  %v28 = vld [vmem:[%s1 + $0x48] sm:$0xff]
  %v29 = vld [vmem:[%s1 + $0x50] sm:$0xff]
  %v30 = vld [vmem:[%s1 + $0x58] sm:$0xff]
  %v31 = vld [vmem:[%s1 + $0x60] sm:$0xff]
  %v32 = vld [vmem:[%s1 + $0x68] sm:$0xff]
  %v33 = vld [vmem:[%s1 + $0x70] sm:$0xff]
  %v34 = vld [vmem:[%s1 + $0x78] sm:$0xff]
  %v35 = vld [vmem:[%s1 + $0x80] sm:$0xff]
  %v36 = vld [vmem:[%s1 + $0x88] sm:$0xff]
  %v37 = vld [vmem:[%s1 + $0x90] sm:$0xff]
  %v38 = vld [vmem:[%s1 + $0x98] sm:$0xff]
  %v39 = vld [vmem:[%s1 + $0xa0] sm:$0xff]
  %v40 = vld [vmem:[%s1 + $0xa8] sm:$0xff]
  %v41 = vld [vmem:[%s1 + $0xb0] sm:$0xff]
  %v42 = vld [vmem:[%s1 + $0xb8] sm:$0xff]
  %v43 = vld [vmem:[%s1 + $0xc0] sm:$0xff]
  %v44 = vld [vmem:[%s1 + $0xc8] sm:$0xff]
  %v45 = vld [vmem:[%s1 + $0xd0] sm:$0xff]
  %v46 = vld [vmem:[%s1 + $0xd8] sm:$0xff]
  %v47 = vld [vmem:[%s1 + $0xe0] sm:$0xff]
  %v48 = vld [vmem:[%s1 + $0xe8] sm:$0xff]
  %v49 = vld [vmem:[%s1 + $0xf0] sm:$0xff]
  %v50 = vld [vmem:[%s1 + $0xf8] sm:$0xff]
  %v51 = vld [vmem:[%s1 + $0x100] sm:$0xff]
  %v52 = vld [vmem:[%s1 + $0x108] sm:$0xff]
  %v53 = vld [vmem:[%s1 + $0x110] sm:$0xff]
  %v54 = vld [vmem:[%s1 + $0x118] sm:$0xff]
  %v55 = vld [vmem:[%s1 + $0x120] sm:$0xff]
  %v56 = vld [vmem:[%s1 + $0x128] sm:$0xff]
  %v57 = vld [vmem:[%s1 + $0x130] sm:$0xff]
  %v58 = vld [vmem:[%s1 + $0x138] sm:$0xff]
  %v59 = vld [vmem:[%s1 + $0x140] sm:$0xff]
  %v60 = vld [vmem:[%s1 + $0x148] sm:$0xff]
  %v61 = vld [vmem:[%s1 + $0x150] sm:$0xff]
  %v62 = vld [vmem:[%s1 + $0x158] sm:$0xff]
  %v63 = vld [vmem:[%s1 + $0x160] sm:$0xff]
  %v64 = vld [vmem:[%s1 + $0x168] sm:$0xff]
  %v65 = vld [vmem:[%s1 + $0x170] sm:$0xff]
  %v66 = vld [vmem:[%s1 + $0x178] sm:$0xff]
  %v67 = vld [vmem:[%s2] sm:$0x1]
  %v68 = vld [vmem:[%s3] sm:$0xff]
  %v69 = vld [vmem:[%s0] sm:$0xff]
  %v70 = vld [vmem:[%s0 + $0x8] sm:$0xff]
  %v71 = vld [vmem:[%s0 + $0x10] sm:$0xff]
  %72 = vmatprep.subr.mxu0 %v20
  %73 = vmatpush1.msra.mxu0 %v19
  %74 = vmatprep.subr.mxu0 %v23
  %75 = vmatpush1.msra.mxu0 %v22
  %76 = vmatprep.subr.mxu0 %v26
  %77 = vmatpush1.msra.mxu0 %v25
  %78 = vmatprep.subr.mxu0 %v29
  %79 = vmatpush1.msra.mxu0 %v28
  %80 = vmatprep.subr.mxu0 %v32
  %81 = vmatpush1.msra.mxu0 %v31
  %82 = vmatprep.subr.mxu0 %v35
  %83 = vmatpush1.msra.mxu0 %v34
  %84 = vmatprep.subr.mxu0 %v38
  %85 = vmatpush1.msra.mxu0 %v37
  %86 = vmatprep.subr.mxu0 %v41
  %87 = vmatpush1.msra.mxu0 %v40
  %88 = vmatprep.subr.mxu0 %v44
  %89 = vmatpush1.msra.mxu0 %v43
  %90 = vmatprep.subr.mxu0 %v47
  %91 = vmatpush1.msra.mxu0 %v46
  %92 = vmatprep.subr.mxu0 %v50
  %93 = vmatpush1.msra.mxu0 %v49
  %94 = vmatprep.subr.mxu0 %v53
  %95 = vmatpush1.msra.mxu0 %v52
  %96 = vmatprep.subr.mxu0 %v56
  %97 = vmatpush1.msra.mxu0 %v55
  %98 = vmatprep.subr.mxu0 %v59
  %99 = vmatpush1.msra.mxu0 %v58
  %100 = vmatprep.subr.mxu0 %v62
  %101 = vmatpush1.msra.mxu0 %v61
  %102 = vmatprep.subr.mxu0 %v65
  %103 = vmatpush1.msra.mxu0 %v64
  %104 = vmatprep.subr.mxu0 0.0
  %105 = vmatpush1.msra.mxu0 0.0
  %106 = vmatprep.subr.mxu0 0.0
  %107 = vmatpush1.msra.mxu0 0.0
  %108 = vmatprep.subr.mxu0 0.0
  %109 = vmatpush1.msra.mxu0 0.0
  %110 = vmatprep.subr.mxu0 0.0
  %111 = vmatpush1.msra.mxu0 0.0
  %112 = vmatprep.subr.mxu0 0.0
  %113 = vmatpush1.msra.mxu0 0.0
  %114 = vmatprep.subr.mxu0 0.0
  %115 = vmatpush1.msra.mxu0 0.0
  %116 = vmatprep.subr.mxu0 0.0
  %117 = vmatpush1.msra.mxu0 0.0
  %118 = vmatprep.subr.mxu0 0.0
  %119 = vmatpush1.msra.mxu0 0.0
  %120 = vmatprep.subr.mxu0 0.0
  %121 = vmatpush1.msra.mxu0 0.0
  %122 = vmatprep.subr.mxu0 0.0
  %123 = vmatpush1.msra.mxu0 0.0
  %124 = vmatprep.subr.mxu0 0.0
  %125 = vmatpush1.msra.mxu0 0.0
  %126 = vmatprep.subr.mxu0 0.0
  %127 = vmatpush1.msra.mxu0 0.0
  %128 = vmatprep.subr.mxu0 0.0
  %129 = vmatpush1.msra.mxu0 0.0
  %130 = vmatprep.subr.mxu0 0.0
  %131 = vmatpush1.msra.mxu0 0.0
  %132 = vmatprep.subr.mxu0 0.0
  %133 = vmatpush1.msra.mxu0 0.0
  %134 = vmatprep.subr.mxu0 0.0
  %135 = vmatpush1.msra.mxu0 0.0
  %136 = vmatprep.mubr.f32.mxu0 0.0
  %137 = vmatmul.mubr.f32.gmra.mrb[0].mxu0 %v68
  %v138 = vpop.f32.mrb[0].mxu0
  %v139 = vadd.f32 0.0, %v138
  %v140 = vpop.f32.mrb[0].mxu0
  %v141 = vadd.f32 0.0, %v140
  %142 = vdwg.mxu0
  %143 = vmatprep.subr.mxu0 0.0
  %144 = vmatpush1.msra.mxu0 %v21
  %145 = vmatprep.subr.mxu0 0.0
  %146 = vmatpush1.msra.mxu0 %v24
  %147 = vmatprep.subr.mxu0 0.0
  %148 = vmatpush1.msra.mxu0 %v27
  %149 = vmatprep.subr.mxu0 0.0
  %150 = vmatpush1.msra.mxu0 %v30
  %151 = vmatprep.subr.mxu0 0.0
  %152 = vmatpush1.msra.mxu0 %v33
  %153 = vmatprep.subr.mxu0 0.0
  %154 = vmatpush1.msra.mxu0 %v36
  %155 = vmatprep.subr.mxu0 0.0
  %156 = vmatpush1.msra.mxu0 %v39
  %157 = vmatprep.subr.mxu0 0.0
  %158 = vmatpush1.msra.mxu0 %v42
  %159 = vmatprep.subr.mxu0 0.0
  %160 = vmatpush1.msra.mxu0 %v45
  %161 = vmatprep.subr.mxu0 0.0
  %162 = vmatpush1.msra.mxu0 %v48
  %163 = vmatprep.subr.mxu0 0.0
  %164 = vmatpush1.msra.mxu0 %v51
  %165 = vmatprep.subr.mxu0 0.0
  %166 = vmatpush1.msra.mxu0 %v54
  %167 = vmatprep.subr.mxu0 0.0
  %168 = vmatpush1.msra.mxu0 %v57
  %169 = vmatprep.subr.mxu0 0.0
  %170 = vmatpush1.msra.mxu0 %v60
  %171 = vmatprep.subr.mxu0 0.0
  %172 = vmatpush1.msra.mxu0 %v63
  %173 = vmatprep.subr.mxu0 0.0
  %174 = vmatpush1.msra.mxu0 %v66
  %175 = vmatprep.subr.mxu0 0.0
  %176 = vmatpush1.msra.mxu0 0.0
  %177 = vmatprep.subr.mxu0 0.0
  %178 = vmatpush1.msra.mxu0 0.0
  %179 = vmatprep.subr.mxu0 0.0
  %180 = vmatpush1.msra.mxu0 0.0
  %181 = vmatprep.subr.mxu0 0.0
  %182 = vmatpush1.msra.mxu0 0.0
  %183 = vmatprep.subr.mxu0 0.0
  %184 = vmatpush1.msra.mxu0 0.0
  %185 = vmatprep.subr.mxu0 0.0
  %186 = vmatpush1.msra.mxu0 0.0
  %187 = vmatprep.subr.mxu0 0.0
  %188 = vmatpush1.msra.mxu0 0.0
  %189 = vmatprep.subr.mxu0 0.0
  %190 = vmatpush1.msra.mxu0 0.0
  %191 = vmatprep.subr.mxu0 0.0
  %192 = vmatpush1.msra.mxu0 0.0
  %193 = vmatprep.subr.mxu0 0.0
  %194 = vmatpush1.msra.mxu0 0.0
  %195 = vmatprep.subr.mxu0 0.0
  %196 = vmatpush1.msra.mxu0 0.0
  %197 = vmatprep.subr.mxu0 0.0
  %198 = vmatpush1.msra.mxu0 0.0
  %199 = vmatprep.subr.mxu0 0.0
  %200 = vmatpush1.msra.mxu0 0.0
  %201 = vmatprep.subr.mxu0 0.0
  %202 = vmatpush1.msra.mxu0 0.0
  %203 = vmatprep.subr.mxu0 0.0
  %204 = vmatpush1.msra.mxu0 0.0
  %205 = vmatprep.subr.mxu0 0.0
  %206 = vmatpush1.msra.mxu0 0.0
  %207 = vmatprep.mubr.f32.mxu0 0.0
  %208 = vmatmul.mubr.f32.gmra.mrb[0].mxu0 %v68
  %v209 = vpop.f32.mrb[0].mxu0
  %v210 = vadd.f32 0.0, %v209
  %v211 = vpop.f32.mrb[0].mxu0
  %212 = vdwg.mxu0
  %v213 = vadd.f32 %v69, %v139
  %v214 = vadd.f32 %v70, %v141
  %v215 = vxor.u32 %v213, 2147483648
  %v216 = vxor.u32 %v214, 2147483648
  %v217 = vmul.f32 %v215, 1.442695
  %v218 = vpow.pop %v217
  %v219 = vmul.f32 %v216, 1.442695
  %v220 = vpow.pop %v219
  %v221 = vadd.f32 %v218, 1.0
  %v222 = vadd.f32 %v220, 1.0
  %v223 = vrcp.pop %v221
  %v224 = vmul.f32 1.0, %v223
  %v225 = vrcp.pop %v222
  %v226 = vmul.f32 1.0, %v225
  %v228 = vlaneseq
  %v229 = vshrl.u32 %v228, 7
  %v230 = vsub.s32 0, %v229
  %v231 = vrot.slane %v67, %v230
  %v233 = vadd.f32 %v210, %v231
  %v234 = vmul.f32 %v224, %v233
  %v235 = vadd.f32 %v71, %v234
  %v236 = vtanh.pop %v235
  %v237 = vsub.f32 1.0, %v226
  %v238 = vmul.f32 %v237, %v236
  %v239 = vmul.f32 %v226, %v68
  %v240 = vadd.f32 %v238, %v239
  %s241 = smul.u32 0, 8
  %p242 = scmp.lt.s32.totalorder %s241, 8
  %s243 = scalar_select %p242, 1, 0
  %v244 = vstv %s243
  %vm245 = vcmp.eq.s32.totalorder %v244, 1
  %v246 = vsel %vm245, %v240, %v68
  %s247 = scalar_lea.vmem %s0, 24
  %v248 = vld [vmem:[%s247] sm:$0xff]
  %v249 = vld [vmem:[%s247 + $0x8] sm:$0xff]
  %v250 = vld [vmem:[%s247 + $0x10] sm:$0xff]
  %251 = vmatprep.subr.mxu0 %v20
  %252 = vmatpush1.msra.mxu0 %v19
  %253 = vmatprep.subr.mxu0 %v23
  %254 = vmatpush1.msra.mxu0 %v22
  %255 = vmatprep.subr.mxu0 %v26
  %256 = vmatpush1.msra.mxu0 %v25
  %257 = vmatprep.subr.mxu0 %v29
  %258 = vmatpush1.msra.mxu0 %v28
  %259 = vmatprep.subr.mxu0 %v32
  %260 = vmatpush1.msra.mxu0 %v31
  %261 = vmatprep.subr.mxu0 %v35
  %262 = vmatpush1.msra.mxu0 %v34
  %263 = vmatprep.subr.mxu0 %v38
  %264 = vmatpush1.msra.mxu0 %v37
  %265 = vmatprep.subr.mxu0 %v41
  %266 = vmatpush1.msra.mxu0 %v40
  %267 = vmatprep.subr.mxu0 %v44
  %268 = vmatpush1.msra.mxu0 %v43
  %269 = vmatprep.subr.mxu0 %v47
  %270 = vmatpush1.msra.mxu0 %v46
  %271 = vmatprep.subr.mxu0 %v50
  %272 = vmatpush1.msra.mxu0 %v49
  %273 = vmatprep.subr.mxu0 %v53
  %274 = vmatpush1.msra.mxu0 %v52
  %275 = vmatprep.subr.mxu0 %v56
  %276 = vmatpush1.msra.mxu0 %v55
  %277 = vmatprep.subr.mxu0 %v59
  %278 = vmatpush1.msra.mxu0 %v58
  %279 = vmatprep.subr.mxu0 %v62
  %280 = vmatpush1.msra.mxu0 %v61
  %281 = vmatprep.subr.mxu0 %v65
  %282 = vmatpush1.msra.mxu0 %v64
  %283 = vmatprep.subr.mxu0 0.0
  %284 = vmatpush1.msra.mxu0 0.0
  %285 = vmatprep.subr.mxu0 0.0
  %286 = vmatpush1.msra.mxu0 0.0
  %287 = vmatprep.subr.mxu0 0.0
  %288 = vmatpush1.msra.mxu0 0.0
  %289 = vmatprep.subr.mxu0 0.0
  %290 = vmatpush1.msra.mxu0 0.0
  %291 = vmatprep.subr.mxu0 0.0
  %292 = vmatpush1.msra.mxu0 0.0
  %293 = vmatprep.subr.mxu0 0.0
  %294 = vmatpush1.msra.mxu0 0.0
  %295 = vmatprep.subr.mxu0 0.0
  %296 = vmatpush1.msra.mxu0 0.0
  %297 = vmatprep.subr.mxu0 0.0
  %298 = vmatpush1.msra.mxu0 0.0
  %299 = vmatprep.subr.mxu0 0.0
  %300 = vmatpush1.msra.mxu0 0.0
  %301 = vmatprep.subr.mxu0 0.0
  %302 = vmatpush1.msra.mxu0 0.0
  %303 = vmatprep.subr.mxu0 0.0
  %304 = vmatpush1.msra.mxu0 0.0
  %305 = vmatprep.subr.mxu0 0.0
  %306 = vmatpush1.msra.mxu0 0.0
  %307 = vmatprep.subr.mxu0 0.0
  %308 = vmatpush1.msra.mxu0 0.0
  %309 = vmatprep.subr.mxu0 0.0
  %310 = vmatpush1.msra.mxu0 0.0
  %311 = vmatprep.subr.mxu0 0.0
  %312 = vmatpush1.msra.mxu0 0.0
  %313 = vmatprep.subr.mxu0 0.0
  %314 = vmatpush1.msra.mxu0 0.0
  %315 = vmatprep.mubr.f32.mxu0 0.0
  %316 = vmatmul.mubr.f32.gmra.mrb[0].mxu0 %v246
  %v317 = vpop.f32.mrb[0].mxu0
  %v318 = vadd.f32 0.0, %v317
  %v319 = vpop.f32.mrb[0].mxu0
  %v320 = vadd.f32 0.0, %v319
  %321 = vdwg.mxu0
  %322 = vmatprep.subr.mxu0 0.0
  %323 = vmatpush1.msra.mxu0 %v21
  %324 = vmatprep.subr.mxu0 0.0
  %325 = vmatpush1.msra.mxu0 %v24
  %326 = vmatprep.subr.mxu0 0.0
  %327 = vmatpush1.msra.mxu0 %v27
  %328 = vmatprep.subr.mxu0 0.0
  %329 = vmatpush1.msra.mxu0 %v30
  %330 = vmatprep.subr.mxu0 0.0
  %331 = vmatpush1.msra.mxu0 %v33
  %332 = vmatprep.subr.mxu0 0.0
  %333 = vmatpush1.msra.mxu0 %v36
  %334 = vmatprep.subr.mxu0 0.0
  %335 = vmatpush1.msra.mxu0 %v39
  %336 = vmatprep.subr.mxu0 0.0
  %337 = vmatpush1.msra.mxu0 %v42
  %338 = vmatprep.subr.mxu0 0.0
  %339 = vmatpush1.msra.mxu0 %v45
  %340 = vmatprep.subr.mxu0 0.0
  %341 = vmatpush1.msra.mxu0 %v48
  %342 = vmatprep.subr.mxu0 0.0
  %343 = vmatpush1.msra.mxu0 %v51
  %344 = vmatprep.subr.mxu0 0.0
  %345 = vmatpush1.msra.mxu0 %v54
  %346 = vmatprep.subr.mxu0 0.0
  %347 = vmatpush1.msra.mxu0 %v57
  %348 = vmatprep.subr.mxu0 0.0
  %349 = vmatpush1.msra.mxu0 %v60
  %350 = vmatprep.subr.mxu0 0.0
  %351 = vmatpush1.msra.mxu0 %v63
  %352 = vmatprep.subr.mxu0 0.0
  %353 = vmatpush1.msra.mxu0 %v66
  %354 = vmatprep.subr.mxu0 0.0
  %355 = vmatpush1.msra.mxu0 0.0
  %356 = vmatprep.subr.mxu0 0.0
  %357 = vmatpush1.msra.mxu0 0.0
  %358 = vmatprep.subr.mxu0 0.0
  %359 = vmatpush1.msra.mxu0 0.0
  %360 = vmatprep.subr.mxu0 0.0
  %361 = vmatpush1.msra.mxu0 0.0
  %362 = vmatprep.subr.mxu0 0.0
  %363 = vmatpush1.msra.mxu0 0.0
  %364 = vmatprep.subr.mxu0 0.0
  %365 = vmatpush1.msra.mxu0 0.0
  %366 = vmatprep.subr.mxu0 0.0
  %367 = vmatpush1.msra.mxu0 0.0
  %368 = vmatprep.subr.mxu0 0.0
  %369 = vmatpush1.msra.mxu0 0.0
  %370 = vmatprep.subr.mxu0 0.0
  %371 = vmatpush1.msra.mxu0 0.0
  %372 = vmatprep.subr.mxu0 0.0
  %373 = vmatpush1.msra.mxu0 0.0
  %374 = vmatprep.subr.mxu0 0.0
  %375 = vmatpush1.msra.mxu0 0.0
  %376 = vmatprep.subr.mxu0 0.0
  %377 = vmatpush1.msra.mxu0 0.0
  %378 = vmatprep.subr.mxu0 0.0
  %379 = vmatpush1.msra.mxu0 0.0
  %380 = vmatprep.subr.mxu0 0.0
  %381 = vmatpush1.msra.mxu0 0.0
  %382 = vmatprep.subr.mxu0 0.0
  %383 = vmatpush1.msra.mxu0 0.0
  %384 = vmatprep.subr.mxu0 0.0
  %385 = vmatpush1.msra.mxu0 0.0
  %386 = vmatprep.mubr.f32.mxu0 0.0
  %387 = vmatmul.mubr.f32.gmra.mrb[0].mxu0 %v246
  %v388 = vpop.f32.mrb[0].mxu0
  %v389 = vadd.f32 0.0, %v388
  %v390 = vpop.f32.mrb[0].mxu0
  %391 = vdwg.mxu0
  %v392 = vadd.f32 %v248, %v318
  %v393 = vadd.f32 %v249, %v320
  %v394 = vxor.u32 %v392, 2147483648
  %v395 = vxor.u32 %v393, 2147483648
  %v396 = vmul.f32 %v394, 1.442695
  %v397 = vpow.pop %v396
  %v398 = vmul.f32 %v395, 1.442695
  %v399 = vpow.pop %v398
  %v400 = vadd.f32 %v397, 1.0
  %v401 = vadd.f32 %v399, 1.0
  %v402 = vrcp.pop %v400
  %v403 = vmul.f32 1.0, %v402
  %v404 = vrcp.pop %v401
  %v405 = vmul.f32 1.0, %v404
  %v406 = vadd.f32 %v389, %v231
  %v407 = vmul.f32 %v403, %v406
  %v408 = vadd.f32 %v250, %v407
  %v409 = vtanh.pop %v408
  %v410 = vsub.f32 1.0, %v405
  %v411 = vmul.f32 %v410, %v409
  %v412 = vmul.f32 %v405, %v246
  %v413 = vadd.f32 %v411, %v412
  %s414 = sadd.s32 %s241, 1
  %p415 = scmp.lt.s32.totalorder %s414, 8
  %s416 = scalar_select %p415, 1, 0
  %v417 = vstv %s416
  %vm418 = vcmp.eq.s32.totalorder %v417, 1
  %v419 = vsel %vm418, %v413, %v246
  %s420 = scalar_lea.vmem %s0, 48
  %v421 = vld [vmem:[%s420] sm:$0xff]
  %v422 = vld [vmem:[%s420 + $0x8] sm:$0xff]
  %v423 = vld [vmem:[%s420 + $0x10] sm:$0xff]
  %424 = vmatprep.subr.mxu0 %v20
  %425 = vmatpush1.msra.mxu0 %v19
  %426 = vmatprep.subr.mxu0 %v23
  %427 = vmatpush1.msra.mxu0 %v22
  %428 = vmatprep.subr.mxu0 %v26
  %429 = vmatpush1.msra.mxu0 %v25
  %430 = vmatprep.subr.mxu0 %v29
  %431 = vmatpush1.msra.mxu0 %v28
  %432 = vmatprep.subr.mxu0 %v32
  %433 = vmatpush1.msra.mxu0 %v31
  %434 = vmatprep.subr.mxu0 %v35
  %435 = vmatpush1.msra.mxu0 %v34
  %436 = vmatprep.subr.mxu0 %v38
  %437 = vmatpush1.msra.mxu0 %v37
  %438 = vmatprep.subr.mxu0 %v41
  %439 = vmatpush1.msra.mxu0 %v40
  %440 = vmatprep.subr.mxu0 %v44
  %441 = vmatpush1.msra.mxu0 %v43
  %442 = vmatprep.subr.mxu0 %v47
  %443 = vmatpush1.msra.mxu0 %v46
  %444 = vmatprep.subr.mxu0 %v50
  %445 = vmatpush1.msra.mxu0 %v49
  %446 = vmatprep.subr.mxu0 %v53
  %447 = vmatpush1.msra.mxu0 %v52
  %448 = vmatprep.subr.mxu0 %v56
  %449 = vmatpush1.msra.mxu0 %v55
  %450 = vmatprep.subr.mxu0 %v59
  %451 = vmatpush1.msra.mxu0 %v58
  %452 = vmatprep.subr.mxu0 %v62
  %453 = vmatpush1.msra.mxu0 %v61
  %454 = vmatprep.subr.mxu0 %v65
  %455 = vmatpush1.msra.mxu0 %v64
  %456 = vmatprep.subr.mxu0 0.0
  %457 = vmatpush1.msra.mxu0 0.0
  %458 = vmatprep.subr.mxu0 0.0
  %459 = vmatpush1.msra.mxu0 0.0
  %460 = vmatprep.subr.mxu0 0.0
  %461 = vmatpush1.msra.mxu0 0.0
  %462 = vmatprep.subr.mxu0 0.0
  %463 = vmatpush1.msra.mxu0 0.0
  %464 = vmatprep.subr.mxu0 0.0
  %465 = vmatpush1.msra.mxu0 0.0
  %466 = vmatprep.subr.mxu0 0.0
  %467 = vmatpush1.msra.mxu0 0.0
  %468 = vmatprep.subr.mxu0 0.0
  %469 = vmatpush1.msra.mxu0 0.0
  %470 = vmatprep.subr.mxu0 0.0
  %471 = vmatpush1.msra.mxu0 0.0
  %472 = vmatprep.subr.mxu0 0.0
  %473 = vmatpush1.msra.mxu0 0.0
  %474 = vmatprep.subr.mxu0 0.0
  %475 = vmatpush1.msra.mxu0 0.0
  %476 = vmatprep.subr.mxu0 0.0
  %477 = vmatpush1.msra.mxu0 0.0
  %478 = vmatprep.subr.mxu0 0.0
  %479 = vmatpush1.msra.mxu0 0.0
  %480 = vmatprep.subr.mxu0 0.0
  %481 = vmatpush1.msra.mxu0 0.0
  %482 = vmatprep.subr.mxu0 0.0
  %483 = vmatpush1.msra.mxu0 0.0
  %484 = vmatprep.subr.mxu0 0.0
  %485 = vmatpush1.msra.mxu0 0.0
  %486 = vmatprep.subr.mxu0 0.0
  %487 = vmatpush1.msra.mxu0 0.0
  %488 = vmatprep.mubr.f32.mxu0 0.0
  %489 = vmatmul.mubr.f32.gmra.mrb[0].mxu0 %v419
  %v490 = vpop.f32.mrb[0].mxu0
  %v491 = vadd.f32 0.0, %v490
  %v492 = vpop.f32.mrb[0].mxu0
  %v493 = vadd.f32 0.0, %v492
  %494 = vdwg.mxu0
  %495 = vmatprep.subr.mxu0 0.0
  %496 = vmatpush1.msra.mxu0 %v21
  %497 = vmatprep.subr.mxu0 0.0
  %498 = vmatpush1.msra.mxu0 %v24
  %499 = vmatprep.subr.mxu0 0.0
  %500 = vmatpush1.msra.mxu0 %v27
  %501 = vmatprep.subr.mxu0 0.0
  %502 = vmatpush1.msra.mxu0 %v30
  %503 = vmatprep.subr.mxu0 0.0
  %504 = vmatpush1.msra.mxu0 %v33
  %505 = vmatprep.subr.mxu0 0.0
  %506 = vmatpush1.msra.mxu0 %v36
  %507 = vmatprep.subr.mxu0 0.0
  %508 = vmatpush1.msra.mxu0 %v39
  %509 = vmatprep.subr.mxu0 0.0
  %510 = vmatpush1.msra.mxu0 %v42
  %511 = vmatprep.subr.mxu0 0.0
  %512 = vmatpush1.msra.mxu0 %v45
  %513 = vmatprep.subr.mxu0 0.0
  %514 = vmatpush1.msra.mxu0 %v48
  %515 = vmatprep.subr.mxu0 0.0
  %516 = vmatpush1.msra.mxu0 %v51
  %517 = vmatprep.subr.mxu0 0.0
  %518 = vmatpush1.msra.mxu0 %v54
  %519 = vmatprep.subr.mxu0 0.0
  %520 = vmatpush1.msra.mxu0 %v57
  %521 = vmatprep.subr.mxu0 0.0
  %522 = vmatpush1.msra.mxu0 %v60
  %523 = vmatprep.subr.mxu0 0.0
  %524 = vmatpush1.msra.mxu0 %v63
  %525 = vmatprep.subr.mxu0 0.0
  %526 = vmatpush1.msra.mxu0 %v66
  %527 = vmatprep.subr.mxu0 0.0
  %528 = vmatpush1.msra.mxu0 0.0
  %529 = vmatprep.subr.mxu0 0.0
  %530 = vmatpush1.msra.mxu0 0.0
  %531 = vmatprep.subr.mxu0 0.0
  %532 = vmatpush1.msra.mxu0 0.0
  %533 = vmatprep.subr.mxu0 0.0
  %534 = vmatpush1.msra.mxu0 0.0
  %535 = vmatprep.subr.mxu0 0.0
  %536 = vmatpush1.msra.mxu0 0.0
  %537 = vmatprep.subr.mxu0 0.0
  %538 = vmatpush1.msra.mxu0 0.0
  %539 = vmatprep.subr.mxu0 0.0
  %540 = vmatpush1.msra.mxu0 0.0
  %541 = vmatprep.subr.mxu0 0.0
  %542 = vmatpush1.msra.mxu0 0.0
  %543 = vmatprep.subr.mxu0 0.0
  %544 = vmatpush1.msra.mxu0 0.0
  %545 = vmatprep.subr.mxu0 0.0
  %546 = vmatpush1.msra.mxu0 0.0
  %547 = vmatprep.subr.mxu0 0.0
  %548 = vmatpush1.msra.mxu0 0.0
  %549 = vmatprep.subr.mxu0 0.0
  %550 = vmatpush1.msra.mxu0 0.0
  %551 = vmatprep.subr.mxu0 0.0
  %552 = vmatpush1.msra.mxu0 0.0
  %553 = vmatprep.subr.mxu0 0.0
  %554 = vmatpush1.msra.mxu0 0.0
  %555 = vmatprep.subr.mxu0 0.0
  %556 = vmatpush1.msra.mxu0 0.0
  %557 = vmatprep.subr.mxu0 0.0
  %558 = vmatpush1.msra.mxu0 0.0
  %559 = vmatprep.mubr.f32.mxu0 0.0
  %560 = vmatmul.mubr.f32.gmra.mrb[0].mxu0 %v419
  %v561 = vpop.f32.mrb[0].mxu0
  %v562 = vadd.f32 0.0, %v561
  %v563 = vpop.f32.mrb[0].mxu0
  %564 = vdwg.mxu0
  %v565 = vadd.f32 %v421, %v491
  %v566 = vadd.f32 %v422, %v493
  %v567 = vxor.u32 %v565, 2147483648
  %v568 = vxor.u32 %v566, 2147483648
  %v569 = vmul.f32 %v567, 1.442695
  %v570 = vpow.pop %v569
  %v571 = vmul.f32 %v568, 1.442695
  %v572 = vpow.pop %v571
  %v573 = vadd.f32 %v570, 1.0
  %v574 = vadd.f32 %v572, 1.0
  %v575 = vrcp.pop %v573
  %v576 = vmul.f32 1.0, %v575
  %v577 = vrcp.pop %v574
  %v578 = vmul.f32 1.0, %v577
  %v579 = vadd.f32 %v562, %v231
  %v580 = vmul.f32 %v576, %v579
  %v581 = vadd.f32 %v423, %v580
  %v582 = vtanh.pop %v581
  %v583 = vsub.f32 1.0, %v578
  %v584 = vmul.f32 %v583, %v582
  %v585 = vmul.f32 %v578, %v419
  %v586 = vadd.f32 %v584, %v585
  %s587 = sadd.s32 %s241, 2
  %p588 = scmp.lt.s32.totalorder %s587, 8
  %s589 = scalar_select %p588, 1, 0
  %v590 = vstv %s589
  %vm591 = vcmp.eq.s32.totalorder %v590, 1
  %v592 = vsel %vm591, %v586, %v419
  %s593 = scalar_lea.vmem %s0, 72
  %v594 = vld [vmem:[%s593] sm:$0xff]
  %v595 = vld [vmem:[%s593 + $0x8] sm:$0xff]
  %v596 = vld [vmem:[%s593 + $0x10] sm:$0xff]
  %597 = vmatprep.subr.mxu0 %v20
  %598 = vmatpush1.msra.mxu0 %v19
  %599 = vmatprep.subr.mxu0 %v23
  %600 = vmatpush1.msra.mxu0 %v22
  %601 = vmatprep.subr.mxu0 %v26
  %602 = vmatpush1.msra.mxu0 %v25
  %603 = vmatprep.subr.mxu0 %v29
  %604 = vmatpush1.msra.mxu0 %v28
  %605 = vmatprep.subr.mxu0 %v32
  %606 = vmatpush1.msra.mxu0 %v31
  %607 = vmatprep.subr.mxu0 %v35
  %608 = vmatpush1.msra.mxu0 %v34
  %609 = vmatprep.subr.mxu0 %v38
  %610 = vmatpush1.msra.mxu0 %v37
  %611 = vmatprep.subr.mxu0 %v41
  %612 = vmatpush1.msra.mxu0 %v40
  %613 = vmatprep.subr.mxu0 %v44
  %614 = vmatpush1.msra.mxu0 %v43
  %615 = vmatprep.subr.mxu0 %v47
  %616 = vmatpush1.msra.mxu0 %v46
  %617 = vmatprep.subr.mxu0 %v50
  %618 = vmatpush1.msra.mxu0 %v49
  %619 = vmatprep.subr.mxu0 %v53
  %620 = vmatpush1.msra.mxu0 %v52
  %621 = vmatprep.subr.mxu0 %v56
  %622 = vmatpush1.msra.mxu0 %v55
  %623 = vmatprep.subr.mxu0 %v59
  %624 = vmatpush1.msra.mxu0 %v58
  %625 = vmatprep.subr.mxu0 %v62
  %626 = vmatpush1.msra.mxu0 %v61
  %627 = vmatprep.subr.mxu0 %v65
  %628 = vmatpush1.msra.mxu0 %v64
  %629 = vmatprep.subr.mxu0 0.0
  %630 = vmatpush1.msra.mxu0 0.0
  %631 = vmatprep.subr.mxu0 0.0
  %632 = vmatpush1.msra.mxu0 0.0
  %633 = vmatprep.subr.mxu0 0.0
  %634 = vmatpush1.msra.mxu0 0.0
  %635 = vmatprep.subr.mxu0 0.0
  %636 = vmatpush1.msra.mxu0 0.0
  %637 = vmatprep.subr.mxu0 0.0
  %638 = vmatpush1.msra.mxu0 0.0
  %639 = vmatprep.subr.mxu0 0.0
  %640 = vmatpush1.msra.mxu0 0.0
  %641 = vmatprep.subr.mxu0 0.0
  %642 = vmatpush1.msra.mxu0 0.0
  %643 = vmatprep.subr.mxu0 0.0
  %644 = vmatpush1.msra.mxu0 0.0
  %645 = vmatprep.subr.mxu0 0.0
  %646 = vmatpush1.msra.mxu0 0.0
  %647 = vmatprep.subr.mxu0 0.0
  %648 = vmatpush1.msra.mxu0 0.0
  %649 = vmatprep.subr.mxu0 0.0
  %650 = vmatpush1.msra.mxu0 0.0
  %651 = vmatprep.subr.mxu0 0.0
  %652 = vmatpush1.msra.mxu0 0.0
  %653 = vmatprep.subr.mxu0 0.0
  %654 = vmatpush1.msra.mxu0 0.0
  %655 = vmatprep.subr.mxu0 0.0
  %656 = vmatpush1.msra.mxu0 0.0
  %657 = vmatprep.subr.mxu0 0.0
  %658 = vmatpush1.msra.mxu0 0.0
  %659 = vmatprep.subr.mxu0 0.0
  %660 = vmatpush1.msra.mxu0 0.0
  %661 = vmatprep.mubr.f32.mxu0 0.0
  %662 = vmatmul.mubr.f32.gmra.mrb[0].mxu0 %v592
  %v663 = vpop.f32.mrb[0].mxu0
  %v664 = vadd.f32 0.0, %v663
  %v665 = vpop.f32.mrb[0].mxu0
  %v666 = vadd.f32 0.0, %v665
  %667 = vdwg.mxu0
  %668 = vmatprep.subr.mxu0 0.0
  %669 = vmatpush1.msra.mxu0 %v21
  %670 = vmatprep.subr.mxu0 0.0
  %671 = vmatpush1.msra.mxu0 %v24
  %672 = vmatprep.subr.mxu0 0.0
  %673 = vmatpush1.msra.mxu0 %v27
  %674 = vmatprep.subr.mxu0 0.0
  %675 = vmatpush1.msra.mxu0 %v30
  %676 = vmatprep.subr.mxu0 0.0
  %677 = vmatpush1.msra.mxu0 %v33
  %678 = vmatprep.subr.mxu0 0.0
  %679 = vmatpush1.msra.mxu0 %v36
  %680 = vmatprep.subr.mxu0 0.0
  %681 = vmatpush1.msra.mxu0 %v39
  %682 = vmatprep.subr.mxu0 0.0
  %683 = vmatpush1.msra.mxu0 %v42
  %684 = vmatprep.subr.mxu0 0.0
  %685 = vmatpush1.msra.mxu0 %v45
  %686 = vmatprep.subr.mxu0 0.0
  %687 = vmatpush1.msra.mxu0 %v48
  %688 = vmatprep.subr.mxu0 0.0
  %689 = vmatpush1.msra.mxu0 %v51
  %690 = vmatprep.subr.mxu0 0.0
  %691 = vmatpush1.msra.mxu0 %v54
  %692 = vmatprep.subr.mxu0 0.0
  %693 = vmatpush1.msra.mxu0 %v57
  %694 = vmatprep.subr.mxu0 0.0
  %695 = vmatpush1.msra.mxu0 %v60
  %696 = vmatprep.subr.mxu0 0.0
  %697 = vmatpush1.msra.mxu0 %v63
  %698 = vmatprep.subr.mxu0 0.0
  %699 = vmatpush1.msra.mxu0 %v66
  %700 = vmatprep.subr.mxu0 0.0
  %701 = vmatpush1.msra.mxu0 0.0
  %702 = vmatprep.subr.mxu0 0.0
  %703 = vmatpush1.msra.mxu0 0.0
  %704 = vmatprep.subr.mxu0 0.0
  %705 = vmatpush1.msra.mxu0 0.0
  %706 = vmatprep.subr.mxu0 0.0
  %707 = vmatpush1.msra.mxu0 0.0
  %708 = vmatprep.subr.mxu0 0.0
  %709 = vmatpush1.msra.mxu0 0.0
  %710 = vmatprep.subr.mxu0 0.0
  %711 = vmatpush1.msra.mxu0 0.0
  %712 = vmatprep.subr.mxu0 0.0
  %713 = vmatpush1.msra.mxu0 0.0
  %714 = vmatprep.subr.mxu0 0.0
  %715 = vmatpush1.msra.mxu0 0.0
  %716 = vmatprep.subr.mxu0 0.0
  %717 = vmatpush1.msra.mxu0 0.0
  %718 = vmatprep.subr.mxu0 0.0
  %719 = vmatpush1.msra.mxu0 0.0
  %720 = vmatprep.subr.mxu0 0.0
  %721 = vmatpush1.msra.mxu0 0.0
  %722 = vmatprep.subr.mxu0 0.0
  %723 = vmatpush1.msra.mxu0 0.0
  %724 = vmatprep.subr.mxu0 0.0
  %725 = vmatpush1.msra.mxu0 0.0
  %726 = vmatprep.subr.mxu0 0.0
  %727 = vmatpush1.msra.mxu0 0.0
  %728 = vmatprep.subr.mxu0 0.0
  %729 = vmatpush1.msra.mxu0 0.0
  %730 = vmatprep.subr.mxu0 0.0
  %731 = vmatpush1.msra.mxu0 0.0
  %732 = vmatprep.mubr.f32.mxu0 0.0
  %733 = vmatmul.mubr.f32.gmra.mrb[0].mxu0 %v592
  %v734 = vpop.f32.mrb[0].mxu0
  %v735 = vadd.f32 0.0, %v734
  %v736 = vpop.f32.mrb[0].mxu0
  %737 = vdwg.mxu0
  %v738 = vadd.f32 %v594, %v664
  %v739 = vadd.f32 %v595, %v666
  %v740 = vxor.u32 %v738, 2147483648
  %v741 = vxor.u32 %v739, 2147483648
  %v742 = vmul.f32 %v740, 1.442695
  %v743 = vpow.pop %v742
  %v744 = vmul.f32 %v741, 1.442695
  %v745 = vpow.pop %v744
  %v746 = vadd.f32 %v743, 1.0
  %v747 = vadd.f32 %v745, 1.0
  %v748 = vrcp.pop %v746
  %v749 = vmul.f32 1.0, %v748
  %v750 = vrcp.pop %v747
  %v751 = vmul.f32 1.0, %v750
  %v752 = vadd.f32 %v735, %v231
  %v753 = vmul.f32 %v749, %v752
  %v754 = vadd.f32 %v596, %v753
  %v755 = vtanh.pop %v754
  %v756 = vsub.f32 1.0, %v751
  %v757 = vmul.f32 %v756, %v755
  %v758 = vmul.f32 %v751, %v592
  %v759 = vadd.f32 %v757, %v758
  %s760 = sadd.s32 %s241, 3
  %p761 = scmp.lt.s32.totalorder %s760, 8
  %s762 = scalar_select %p761, 1, 0
  %v763 = vstv %s762
  %vm764 = vcmp.eq.s32.totalorder %v763, 1
  %v765 = vsel %vm764, %v759, %v592
  %s766 = scalar_lea.vmem %s0, 96
  %v767 = vld [vmem:[%s766] sm:$0xff]
  %v768 = vld [vmem:[%s766 + $0x8] sm:$0xff]
  %v769 = vld [vmem:[%s766 + $0x10] sm:$0xff]
  %770 = vmatprep.subr.mxu0 %v20
  %771 = vmatpush1.msra.mxu0 %v19
  %772 = vmatprep.subr.mxu0 %v23
  %773 = vmatpush1.msra.mxu0 %v22
  %774 = vmatprep.subr.mxu0 %v26
  %775 = vmatpush1.msra.mxu0 %v25
  %776 = vmatprep.subr.mxu0 %v29
  %777 = vmatpush1.msra.mxu0 %v28
  %778 = vmatprep.subr.mxu0 %v32
  %779 = vmatpush1.msra.mxu0 %v31
  %780 = vmatprep.subr.mxu0 %v35
  %781 = vmatpush1.msra.mxu0 %v34
  %782 = vmatprep.subr.mxu0 %v38
  %783 = vmatpush1.msra.mxu0 %v37
  %784 = vmatprep.subr.mxu0 %v41
  %785 = vmatpush1.msra.mxu0 %v40
  %786 = vmatprep.subr.mxu0 %v44
  %787 = vmatpush1.msra.mxu0 %v43
  %788 = vmatprep.subr.mxu0 %v47
  %789 = vmatpush1.msra.mxu0 %v46
  %790 = vmatprep.subr.mxu0 %v50
  %791 = vmatpush1.msra.mxu0 %v49
  %792 = vmatprep.subr.mxu0 %v53
  %793 = vmatpush1.msra.mxu0 %v52
  %794 = vmatprep.subr.mxu0 %v56
  %795 = vmatpush1.msra.mxu0 %v55
  %796 = vmatprep.subr.mxu0 %v59
  %797 = vmatpush1.msra.mxu0 %v58
  %798 = vmatprep.subr.mxu0 %v62
  %799 = vmatpush1.msra.mxu0 %v61
  %800 = vmatprep.subr.mxu0 %v65
  %801 = vmatpush1.msra.mxu0 %v64
  %802 = vmatprep.subr.mxu0 0.0
  %803 = vmatpush1.msra.mxu0 0.0
  %804 = vmatprep.subr.mxu0 0.0
  %805 = vmatpush1.msra.mxu0 0.0
  %806 = vmatprep.subr.mxu0 0.0
  %807 = vmatpush1.msra.mxu0 0.0
  %808 = vmatprep.subr.mxu0 0.0
  %809 = vmatpush1.msra.mxu0 0.0
  %810 = vmatprep.subr.mxu0 0.0
  %811 = vmatpush1.msra.mxu0 0.0
  %812 = vmatprep.subr.mxu0 0.0
  %813 = vmatpush1.msra.mxu0 0.0
  %814 = vmatprep.subr.mxu0 0.0
  %815 = vmatpush1.msra.mxu0 0.0
  %816 = vmatprep.subr.mxu0 0.0
  %817 = vmatpush1.msra.mxu0 0.0
  %818 = vmatprep.subr.mxu0 0.0
  %819 = vmatpush1.msra.mxu0 0.0
  %820 = vmatprep.subr.mxu0 0.0
  %821 = vmatpush1.msra.mxu0 0.0
  %822 = vmatprep.subr.mxu0 0.0
  %823 = vmatpush1.msra.mxu0 0.0
  %824 = vmatprep.subr.mxu0 0.0
  %825 = vmatpush1.msra.mxu0 0.0
  %826 = vmatprep.subr.mxu0 0.0
  %827 = vmatpush1.msra.mxu0 0.0
  %828 = vmatprep.subr.mxu0 0.0
  %829 = vmatpush1.msra.mxu0 0.0
  %830 = vmatprep.subr.mxu0 0.0
  %831 = vmatpush1.msra.mxu0 0.0
  %832 = vmatprep.subr.mxu0 0.0
  %833 = vmatpush1.msra.mxu0 0.0
  %834 = vmatprep.mubr.f32.mxu0 0.0
  %835 = vmatmul.mubr.f32.gmra.mrb[0].mxu0 %v765
  %v836 = vpop.f32.mrb[0].mxu0
  %v837 = vadd.f32 0.0, %v836
  %v838 = vpop.f32.mrb[0].mxu0
  %v839 = vadd.f32 0.0, %v838
  %840 = vdwg.mxu0
  %841 = vmatprep.subr.mxu0 0.0
  %842 = vmatpush1.msra.mxu0 %v21
  %843 = vmatprep.subr.mxu0 0.0
  %844 = vmatpush1.msra.mxu0 %v24
  %845 = vmatprep.subr.mxu0 0.0
  %846 = vmatpush1.msra.mxu0 %v27
  %847 = vmatprep.subr.mxu0 0.0
  %848 = vmatpush1.msra.mxu0 %v30
  %849 = vmatprep.subr.mxu0 0.0
  %850 = vmatpush1.msra.mxu0 %v33
  %851 = vmatprep.subr.mxu0 0.0
  %852 = vmatpush1.msra.mxu0 %v36
  %853 = vmatprep.subr.mxu0 0.0
  %854 = vmatpush1.msra.mxu0 %v39
  %855 = vmatprep.subr.mxu0 0.0
  %856 = vmatpush1.msra.mxu0 %v42
  %857 = vmatprep.subr.mxu0 0.0
  %858 = vmatpush1.msra.mxu0 %v45
  %859 = vmatprep.subr.mxu0 0.0
  %860 = vmatpush1.msra.mxu0 %v48
  %861 = vmatprep.subr.mxu0 0.0
  %862 = vmatpush1.msra.mxu0 %v51
  %863 = vmatprep.subr.mxu0 0.0
  %864 = vmatpush1.msra.mxu0 %v54
  %865 = vmatprep.subr.mxu0 0.0
  %866 = vmatpush1.msra.mxu0 %v57
  %867 = vmatprep.subr.mxu0 0.0
  %868 = vmatpush1.msra.mxu0 %v60
  %869 = vmatprep.subr.mxu0 0.0
  %870 = vmatpush1.msra.mxu0 %v63
  %871 = vmatprep.subr.mxu0 0.0
  %872 = vmatpush1.msra.mxu0 %v66
  %873 = vmatprep.subr.mxu0 0.0
  %874 = vmatpush1.msra.mxu0 0.0
  %875 = vmatprep.subr.mxu0 0.0
  %876 = vmatpush1.msra.mxu0 0.0
  %877 = vmatprep.subr.mxu0 0.0
  %878 = vmatpush1.msra.mxu0 0.0
  %879 = vmatprep.subr.mxu0 0.0
  %880 = vmatpush1.msra.mxu0 0.0
  %881 = vmatprep.subr.mxu0 0.0
  %882 = vmatpush1.msra.mxu0 0.0
  %883 = vmatprep.subr.mxu0 0.0
  %884 = vmatpush1.msra.mxu0 0.0
  %885 = vmatprep.subr.mxu0 0.0
  %886 = vmatpush1.msra.mxu0 0.0
  %887 = vmatprep.subr.mxu0 0.0
  %888 = vmatpush1.msra.mxu0 0.0
  %889 = vmatprep.subr.mxu0 0.0
  %890 = vmatpush1.msra.mxu0 0.0
  %891 = vmatprep.subr.mxu0 0.0
  %892 = vmatpush1.msra.mxu0 0.0
  %893 = vmatprep.subr.mxu0 0.0
  %894 = vmatpush1.msra.mxu0 0.0
  %895 = vmatprep.subr.mxu0 0.0
  %896 = vmatpush1.msra.mxu0 0.0
  %897 = vmatprep.subr.mxu0 0.0
  %898 = vmatpush1.msra.mxu0 0.0
  %899 = vmatprep.subr.mxu0 0.0
  %900 = vmatpush1.msra.mxu0 0.0
  %901 = vmatprep.subr.mxu0 0.0
  %902 = vmatpush1.msra.mxu0 0.0
  %903 = vmatprep.subr.mxu0 0.0
  %904 = vmatpush1.msra.mxu0 0.0
  %905 = vmatprep.mubr.f32.mxu0 0.0
  %906 = vmatmul.mubr.f32.gmra.mrb[0].mxu0 %v765
  %v907 = vpop.f32.mrb[0].mxu0
  %v908 = vadd.f32 0.0, %v907
  %v909 = vpop.f32.mrb[0].mxu0
  %910 = vdwg.mxu0
  %v911 = vadd.f32 %v767, %v837
  %v912 = vadd.f32 %v768, %v839
  %v913 = vxor.u32 %v911, 2147483648
  %v914 = vxor.u32 %v912, 2147483648
  %v915 = vmul.f32 %v913, 1.442695
  %v916 = vpow.pop %v915
  %v917 = vmul.f32 %v914, 1.442695
  %v918 = vpow.pop %v917
  %v919 = vadd.f32 %v916, 1.0
  %v920 = vadd.f32 %v918, 1.0
  %v921 = vrcp.pop %v919
  %v922 = vmul.f32 1.0, %v921
  %v923 = vrcp.pop %v920
  %v924 = vmul.f32 1.0, %v923
  %v925 = vadd.f32 %v908, %v231
  %v926 = vmul.f32 %v922, %v925
  %v927 = vadd.f32 %v769, %v926
  %v928 = vtanh.pop %v927
  %v929 = vsub.f32 1.0, %v924
  %v930 = vmul.f32 %v929, %v928
  %v931 = vmul.f32 %v924, %v765
  %v932 = vadd.f32 %v930, %v931
  %s933 = sadd.s32 %s241, 4
  %p934 = scmp.lt.s32.totalorder %s933, 8
  %s935 = scalar_select %p934, 1, 0
  %v936 = vstv %s935
  %vm937 = vcmp.eq.s32.totalorder %v936, 1
  %v938 = vsel %vm937, %v932, %v765
  %s939 = scalar_lea.vmem %s0, 120
  %v940 = vld [vmem:[%s939] sm:$0xff]
  %v941 = vld [vmem:[%s939 + $0x8] sm:$0xff]
  %v942 = vld [vmem:[%s939 + $0x10] sm:$0xff]
  %943 = vmatprep.subr.mxu0 %v20
  %944 = vmatpush1.msra.mxu0 %v19
  %945 = vmatprep.subr.mxu0 %v23
  %946 = vmatpush1.msra.mxu0 %v22
  %947 = vmatprep.subr.mxu0 %v26
  %948 = vmatpush1.msra.mxu0 %v25
  %949 = vmatprep.subr.mxu0 %v29
  %950 = vmatpush1.msra.mxu0 %v28
  %951 = vmatprep.subr.mxu0 %v32
  %952 = vmatpush1.msra.mxu0 %v31
  %953 = vmatprep.subr.mxu0 %v35
  %954 = vmatpush1.msra.mxu0 %v34
  %955 = vmatprep.subr.mxu0 %v38
  %956 = vmatpush1.msra.mxu0 %v37
  %957 = vmatprep.subr.mxu0 %v41
  %958 = vmatpush1.msra.mxu0 %v40
  %959 = vmatprep.subr.mxu0 %v44
  %960 = vmatpush1.msra.mxu0 %v43
  %961 = vmatprep.subr.mxu0 %v47
  %962 = vmatpush1.msra.mxu0 %v46
  %963 = vmatprep.subr.mxu0 %v50
  %964 = vmatpush1.msra.mxu0 %v49
  %965 = vmatprep.subr.mxu0 %v53
  %966 = vmatpush1.msra.mxu0 %v52
  %967 = vmatprep.subr.mxu0 %v56
  %968 = vmatpush1.msra.mxu0 %v55
  %969 = vmatprep.subr.mxu0 %v59
  %970 = vmatpush1.msra.mxu0 %v58
  %971 = vmatprep.subr.mxu0 %v62
  %972 = vmatpush1.msra.mxu0 %v61
  %973 = vmatprep.subr.mxu0 %v65
  %974 = vmatpush1.msra.mxu0 %v64
  %975 = vmatprep.subr.mxu0 0.0
  %976 = vmatpush1.msra.mxu0 0.0
  %977 = vmatprep.subr.mxu0 0.0
  %978 = vmatpush1.msra.mxu0 0.0
  %979 = vmatprep.subr.mxu0 0.0
  %980 = vmatpush1.msra.mxu0 0.0
  %981 = vmatprep.subr.mxu0 0.0
  %982 = vmatpush1.msra.mxu0 0.0
  %983 = vmatprep.subr.mxu0 0.0
  %984 = vmatpush1.msra.mxu0 0.0
  %985 = vmatprep.subr.mxu0 0.0
  %986 = vmatpush1.msra.mxu0 0.0
  %987 = vmatprep.subr.mxu0 0.0
  %988 = vmatpush1.msra.mxu0 0.0
  %989 = vmatprep.subr.mxu0 0.0
  %990 = vmatpush1.msra.mxu0 0.0
  %991 = vmatprep.subr.mxu0 0.0
  %992 = vmatpush1.msra.mxu0 0.0
  %993 = vmatprep.subr.mxu0 0.0
  %994 = vmatpush1.msra.mxu0 0.0
  %995 = vmatprep.subr.mxu0 0.0
  %996 = vmatpush1.msra.mxu0 0.0
  %997 = vmatprep.subr.mxu0 0.0
  %998 = vmatpush1.msra.mxu0 0.0
  %999 = vmatprep.subr.mxu0 0.0
  %1000 = vmatpush1.msra.mxu0 0.0
  %1001 = vmatprep.subr.mxu0 0.0
  %1002 = vmatpush1.msra.mxu0 0.0
  %1003 = vmatprep.subr.mxu0 0.0
  %1004 = vmatpush1.msra.mxu0 0.0
  %1005 = vmatprep.subr.mxu0 0.0
  %1006 = vmatpush1.msra.mxu0 0.0
  %1007 = vmatprep.mubr.f32.mxu0 0.0
  %1008 = vmatmul.mubr.f32.gmra.mrb[0].mxu0 %v938
  %v1009 = vpop.f32.mrb[0].mxu0
  %v1010 = vadd.f32 0.0, %v1009
  %v1011 = vpop.f32.mrb[0].mxu0
  %v1012 = vadd.f32 0.0, %v1011
  %1013 = vdwg.mxu0
  %1014 = vmatprep.subr.mxu0 0.0
  %1015 = vmatpush1.msra.mxu0 %v21
  %1016 = vmatprep.subr.mxu0 0.0
  %1017 = vmatpush1.msra.mxu0 %v24
  %1018 = vmatprep.subr.mxu0 0.0
  %1019 = vmatpush1.msra.mxu0 %v27
  %1020 = vmatprep.subr.mxu0 0.0
  %1021 = vmatpush1.msra.mxu0 %v30
  %1022 = vmatprep.subr.mxu0 0.0
  %1023 = vmatpush1.msra.mxu0 %v33
  %1024 = vmatprep.subr.mxu0 0.0
  %1025 = vmatpush1.msra.mxu0 %v36
  %1026 = vmatprep.subr.mxu0 0.0
  %1027 = vmatpush1.msra.mxu0 %v39
  %1028 = vmatprep.subr.mxu0 0.0
  %1029 = vmatpush1.msra.mxu0 %v42
  %1030 = vmatprep.subr.mxu0 0.0
  %1031 = vmatpush1.msra.mxu0 %v45
  %1032 = vmatprep.subr.mxu0 0.0
  %1033 = vmatpush1.msra.mxu0 %v48
  %1034 = vmatprep.subr.mxu0 0.0
  %1035 = vmatpush1.msra.mxu0 %v51
  %1036 = vmatprep.subr.mxu0 0.0
  %1037 = vmatpush1.msra.mxu0 %v54
  %1038 = vmatprep.subr.mxu0 0.0
  %1039 = vmatpush1.msra.mxu0 %v57
  %1040 = vmatprep.subr.mxu0 0.0
  %1041 = vmatpush1.msra.mxu0 %v60
  %1042 = vmatprep.subr.mxu0 0.0
  %1043 = vmatpush1.msra.mxu0 %v63
  %1044 = vmatprep.subr.mxu0 0.0
  %1045 = vmatpush1.msra.mxu0 %v66
  %1046 = vmatprep.subr.mxu0 0.0
  %1047 = vmatpush1.msra.mxu0 0.0
  %1048 = vmatprep.subr.mxu0 0.0
  %1049 = vmatpush1.msra.mxu0 0.0
  %1050 = vmatprep.subr.mxu0 0.0
  %1051 = vmatpush1.msra.mxu0 0.0
  %1052 = vmatprep.subr.mxu0 0.0
  %1053 = vmatpush1.msra.mxu0 0.0
  %1054 = vmatprep.subr.mxu0 0.0
  %1055 = vmatpush1.msra.mxu0 0.0
  %1056 = vmatprep.subr.mxu0 0.0
  %1057 = vmatpush1.msra.mxu0 0.0
  %1058 = vmatprep.subr.mxu0 0.0
  %1059 = vmatpush1.msra.mxu0 0.0
  %1060 = vmatprep.subr.mxu0 0.0
  %1061 = vmatpush1.msra.mxu0 0.0
  %1062 = vmatprep.subr.mxu0 0.0
  %1063 = vmatpush1.msra.mxu0 0.0
  %1064 = vmatprep.subr.mxu0 0.0
  %1065 = vmatpush1.msra.mxu0 0.0
  %1066 = vmatprep.subr.mxu0 0.0
  %1067 = vmatpush1.msra.mxu0 0.0
  %1068 = vmatprep.subr.mxu0 0.0
  %1069 = vmatpush1.msra.mxu0 0.0
  %1070 = vmatprep.subr.mxu0 0.0
  %1071 = vmatpush1.msra.mxu0 0.0
  %1072 = vmatprep.subr.mxu0 0.0
  %1073 = vmatpush1.msra.mxu0 0.0
  %1074 = vmatprep.subr.mxu0 0.0
  %1075 = vmatpush1.msra.mxu0 0.0
  %1076 = vmatprep.subr.mxu0 0.0
  %1077 = vmatpush1.msra.mxu0 0.0
  %1078 = vmatprep.mubr.f32.mxu0 0.0
  %1079 = vmatmul.mubr.f32.gmra.mrb[0].mxu0 %v938
  %v1080 = vpop.f32.mrb[0].mxu0
  %v1081 = vadd.f32 0.0, %v1080
  %v1082 = vpop.f32.mrb[0].mxu0
  %1083 = vdwg.mxu0
  %v1084 = vadd.f32 %v940, %v1010
  %v1085 = vadd.f32 %v941, %v1012
  %v1086 = vxor.u32 %v1084, 2147483648
  %v1087 = vxor.u32 %v1085, 2147483648
  %v1088 = vmul.f32 %v1086, 1.442695
  %v1089 = vpow.pop %v1088
  %v1090 = vmul.f32 %v1087, 1.442695
  %v1091 = vpow.pop %v1090
  %v1092 = vadd.f32 %v1089, 1.0
  %v1093 = vadd.f32 %v1091, 1.0
  %v1094 = vrcp.pop %v1092
  %v1095 = vmul.f32 1.0, %v1094
  %v1096 = vrcp.pop %v1093
  %v1097 = vmul.f32 1.0, %v1096
  %v1098 = vadd.f32 %v1081, %v231
  %v1099 = vmul.f32 %v1095, %v1098
  %v1100 = vadd.f32 %v942, %v1099
  %v1101 = vtanh.pop %v1100
  %v1102 = vsub.f32 1.0, %v1097
  %v1103 = vmul.f32 %v1102, %v1101
  %v1104 = vmul.f32 %v1097, %v938
  %v1105 = vadd.f32 %v1103, %v1104
  %s1106 = sadd.s32 %s241, 5
  %p1107 = scmp.lt.s32.totalorder %s1106, 8
  %s1108 = scalar_select %p1107, 1, 0
  %v1109 = vstv %s1108
  %vm1110 = vcmp.eq.s32.totalorder %v1109, 1
  %v1111 = vsel %vm1110, %v1105, %v938
  %s1112 = scalar_lea.vmem %s0, 144
  %v1113 = vld [vmem:[%s1112] sm:$0xff]
  %v1114 = vld [vmem:[%s1112 + $0x8] sm:$0xff]
  %v1115 = vld [vmem:[%s1112 + $0x10] sm:$0xff]
  %1116 = vmatprep.subr.mxu0 %v20
  %1117 = vmatpush1.msra.mxu0 %v19
  %1118 = vmatprep.subr.mxu0 %v23
  %1119 = vmatpush1.msra.mxu0 %v22
  %1120 = vmatprep.subr.mxu0 %v26
  %1121 = vmatpush1.msra.mxu0 %v25
  %1122 = vmatprep.subr.mxu0 %v29
  %1123 = vmatpush1.msra.mxu0 %v28
  %1124 = vmatprep.subr.mxu0 %v32
  %1125 = vmatpush1.msra.mxu0 %v31
  %1126 = vmatprep.subr.mxu0 %v35
  %1127 = vmatpush1.msra.mxu0 %v34
  %1128 = vmatprep.subr.mxu0 %v38
  %1129 = vmatpush1.msra.mxu0 %v37
  %1130 = vmatprep.subr.mxu0 %v41
  %1131 = vmatpush1.msra.mxu0 %v40
  %1132 = vmatprep.subr.mxu0 %v44
  %1133 = vmatpush1.msra.mxu0 %v43
  %1134 = vmatprep.subr.mxu0 %v47
  %1135 = vmatpush1.msra.mxu0 %v46
  %1136 = vmatprep.subr.mxu0 %v50
  %1137 = vmatpush1.msra.mxu0 %v49
  %1138 = vmatprep.subr.mxu0 %v53
  %1139 = vmatpush1.msra.mxu0 %v52
  %1140 = vmatprep.subr.mxu0 %v56
  %1141 = vmatpush1.msra.mxu0 %v55
  %1142 = vmatprep.subr.mxu0 %v59
  %1143 = vmatpush1.msra.mxu0 %v58
  %1144 = vmatprep.subr.mxu0 %v62
  %1145 = vmatpush1.msra.mxu0 %v61
  %1146 = vmatprep.subr.mxu0 %v65
  %1147 = vmatpush1.msra.mxu0 %v64
  %1148 = vmatprep.subr.mxu0 0.0
  %1149 = vmatpush1.msra.mxu0 0.0
  %1150 = vmatprep.subr.mxu0 0.0
  %1151 = vmatpush1.msra.mxu0 0.0
  %1152 = vmatprep.subr.mxu0 0.0
  %1153 = vmatpush1.msra.mxu0 0.0
  %1154 = vmatprep.subr.mxu0 0.0
  %1155 = vmatpush1.msra.mxu0 0.0
  %1156 = vmatprep.subr.mxu0 0.0
  %1157 = vmatpush1.msra.mxu0 0.0
  %1158 = vmatprep.subr.mxu0 0.0
  %1159 = vmatpush1.msra.mxu0 0.0
  %1160 = vmatprep.subr.mxu0 0.0
  %1161 = vmatpush1.msra.mxu0 0.0
  %1162 = vmatprep.subr.mxu0 0.0
  %1163 = vmatpush1.msra.mxu0 0.0
  %1164 = vmatprep.subr.mxu0 0.0
  %1165 = vmatpush1.msra.mxu0 0.0
  %1166 = vmatprep.subr.mxu0 0.0
  %1167 = vmatpush1.msra.mxu0 0.0
  %1168 = vmatprep.subr.mxu0 0.0
  %1169 = vmatpush1.msra.mxu0 0.0
  %1170 = vmatprep.subr.mxu0 0.0
  %1171 = vmatpush1.msra.mxu0 0.0
  %1172 = vmatprep.subr.mxu0 0.0
  %1173 = vmatpush1.msra.mxu0 0.0
  %1174 = vmatprep.subr.mxu0 0.0
  %1175 = vmatpush1.msra.mxu0 0.0
  %1176 = vmatprep.subr.mxu0 0.0
  %1177 = vmatpush1.msra.mxu0 0.0
  %1178 = vmatprep.subr.mxu0 0.0
  %1179 = vmatpush1.msra.mxu0 0.0
  %1180 = vmatprep.mubr.f32.mxu0 0.0
  %1181 = vmatmul.mubr.f32.gmra.mrb[0].mxu0 %v1111
  %v1182 = vpop.f32.mrb[0].mxu0
  %v1183 = vadd.f32 0.0, %v1182
  %v1184 = vpop.f32.mrb[0].mxu0
  %v1185 = vadd.f32 0.0, %v1184
  %1186 = vdwg.mxu0
  %1187 = vmatprep.subr.mxu0 0.0
  %1188 = vmatpush1.msra.mxu0 %v21
  %1189 = vmatprep.subr.mxu0 0.0
  %1190 = vmatpush1.msra.mxu0 %v24
  %1191 = vmatprep.subr.mxu0 0.0
  %1192 = vmatpush1.msra.mxu0 %v27
  %1193 = vmatprep.subr.mxu0 0.0
  %1194 = vmatpush1.msra.mxu0 %v30
  %1195 = vmatprep.subr.mxu0 0.0
  %1196 = vmatpush1.msra.mxu0 %v33
  %1197 = vmatprep.subr.mxu0 0.0
  %1198 = vmatpush1.msra.mxu0 %v36
  %1199 = vmatprep.subr.mxu0 0.0
  %1200 = vmatpush1.msra.mxu0 %v39
  %1201 = vmatprep.subr.mxu0 0.0
  %1202 = vmatpush1.msra.mxu0 %v42
  %1203 = vmatprep.subr.mxu0 0.0
  %1204 = vmatpush1.msra.mxu0 %v45
  %1205 = vmatprep.subr.mxu0 0.0
  %1206 = vmatpush1.msra.mxu0 %v48
  %1207 = vmatprep.subr.mxu0 0.0
  %1208 = vmatpush1.msra.mxu0 %v51
  %1209 = vmatprep.subr.mxu0 0.0
  %1210 = vmatpush1.msra.mxu0 %v54
  %1211 = vmatprep.subr.mxu0 0.0
  %1212 = vmatpush1.msra.mxu0 %v57
  %1213 = vmatprep.subr.mxu0 0.0
  %1214 = vmatpush1.msra.mxu0 %v60
  %1215 = vmatprep.subr.mxu0 0.0
  %1216 = vmatpush1.msra.mxu0 %v63
  %1217 = vmatprep.subr.mxu0 0.0
  %1218 = vmatpush1.msra.mxu0 %v66
  %1219 = vmatprep.subr.mxu0 0.0
  %1220 = vmatpush1.msra.mxu0 0.0
  %1221 = vmatprep.subr.mxu0 0.0
  %1222 = vmatpush1.msra.mxu0 0.0
  %1223 = vmatprep.subr.mxu0 0.0
  %1224 = vmatpush1.msra.mxu0 0.0
  %1225 = vmatprep.subr.mxu0 0.0
  %1226 = vmatpush1.msra.mxu0 0.0
  %1227 = vmatprep.subr.mxu0 0.0
  %1228 = vmatpush1.msra.mxu0 0.0
  %1229 = vmatprep.subr.mxu0 0.0
  %1230 = vmatpush1.msra.mxu0 0.0
  %1231 = vmatprep.subr.mxu0 0.0
  %1232 = vmatpush1.msra.mxu0 0.0
  %1233 = vmatprep.subr.mxu0 0.0
  %1234 = vmatpush1.msra.mxu0 0.0
  %1235 = vmatprep.subr.mxu0 0.0
  %1236 = vmatpush1.msra.mxu0 0.0
  %1237 = vmatprep.subr.mxu0 0.0
  %1238 = vmatpush1.msra.mxu0 0.0
  %1239 = vmatprep.subr.mxu0 0.0
  %1240 = vmatpush1.msra.mxu0 0.0
  %1241 = vmatprep.subr.mxu0 0.0
  %1242 = vmatpush1.msra.mxu0 0.0
  %1243 = vmatprep.subr.mxu0 0.0
  %1244 = vmatpush1.msra.mxu0 0.0
  %1245 = vmatprep.subr.mxu0 0.0
  %1246 = vmatpush1.msra.mxu0 0.0
  %1247 = vmatprep.subr.mxu0 0.0
  %1248 = vmatpush1.msra.mxu0 0.0
  %1249 = vmatprep.subr.mxu0 0.0
  %1250 = vmatpush1.msra.mxu0 0.0
  %1251 = vmatprep.mubr.f32.mxu0 0.0
  %1252 = vmatmul.mubr.f32.gmra.mrb[0].mxu0 %v1111
  %v1253 = vpop.f32.mrb[0].mxu0
  %v1254 = vadd.f32 0.0, %v1253
  %v1255 = vpop.f32.mrb[0].mxu0
  %1256 = vdwg.mxu0
  %v1257 = vadd.f32 %v1113, %v1183
  %v1258 = vadd.f32 %v1114, %v1185
  %v1259 = vxor.u32 %v1257, 2147483648
  %v1260 = vxor.u32 %v1258, 2147483648
  %v1261 = vmul.f32 %v1259, 1.442695
  %v1262 = vpow.pop %v1261
  %v1263 = vmul.f32 %v1260, 1.442695
  %v1264 = vpow.pop %v1263
  %v1265 = vadd.f32 %v1262, 1.0
  %v1266 = vadd.f32 %v1264, 1.0
  %v1267 = vrcp.pop %v1265
  %v1268 = vmul.f32 1.0, %v1267
  %v1269 = vrcp.pop %v1266
  %v1270 = vmul.f32 1.0, %v1269
  %v1271 = vadd.f32 %v1254, %v231
  %v1272 = vmul.f32 %v1268, %v1271
  %v1273 = vadd.f32 %v1115, %v1272
  %v1274 = vtanh.pop %v1273
  %v1275 = vsub.f32 1.0, %v1270
  %v1276 = vmul.f32 %v1275, %v1274
  %v1277 = vmul.f32 %v1270, %v1111
  %v1278 = vadd.f32 %v1276, %v1277
  %s1279 = sadd.s32 %s241, 6
  %p1280 = scmp.lt.s32.totalorder %s1279, 8
  %s1281 = scalar_select %p1280, 1, 0
  %v1282 = vstv %s1281
  %vm1283 = vcmp.eq.s32.totalorder %v1282, 1
  %v1284 = vsel %vm1283, %v1278, %v1111
  %s1285 = scalar_lea.vmem %s0, 168
  %v1286 = vld [vmem:[%s1285] sm:$0xff]
  %v1287 = vld [vmem:[%s1285 + $0x8] sm:$0xff]
  %v1288 = vld [vmem:[%s1285 + $0x10] sm:$0xff]
  %1289 = vmatprep.subr.mxu0 %v20
  %1290 = vmatpush1.msra.mxu0 %v19
  %1291 = vmatprep.subr.mxu0 %v23
  %1292 = vmatpush1.msra.mxu0 %v22
  %1293 = vmatprep.subr.mxu0 %v26
  %1294 = vmatpush1.msra.mxu0 %v25
  %1295 = vmatprep.subr.mxu0 %v29
  %1296 = vmatpush1.msra.mxu0 %v28
  %1297 = vmatprep.subr.mxu0 %v32
  %1298 = vmatpush1.msra.mxu0 %v31
  %1299 = vmatprep.subr.mxu0 %v35
  %1300 = vmatpush1.msra.mxu0 %v34
  %1301 = vmatprep.subr.mxu0 %v38
  %1302 = vmatpush1.msra.mxu0 %v37
  %1303 = vmatprep.subr.mxu0 %v41
  %1304 = vmatpush1.msra.mxu0 %v40
  %1305 = vmatprep.subr.mxu0 %v44
  %1306 = vmatpush1.msra.mxu0 %v43
  %1307 = vmatprep.subr.mxu0 %v47
  %1308 = vmatpush1.msra.mxu0 %v46
  %1309 = vmatprep.subr.mxu0 %v50
  %1310 = vmatpush1.msra.mxu0 %v49
  %1311 = vmatprep.subr.mxu0 %v53
  %1312 = vmatpush1.msra.mxu0 %v52
  %1313 = vmatprep.subr.mxu0 %v56
  %1314 = vmatpush1.msra.mxu0 %v55
  %1315 = vmatprep.subr.mxu0 %v59
  %1316 = vmatpush1.msra.mxu0 %v58
  %1317 = vmatprep.subr.mxu0 %v62
  %1318 = vmatpush1.msra.mxu0 %v61
  %1319 = vmatprep.subr.mxu0 %v65
  %1320 = vmatpush1.msra.mxu0 %v64
  %1321 = vmatprep.subr.mxu0 0.0
  %1322 = vmatpush1.msra.mxu0 0.0
  %1323 = vmatprep.subr.mxu0 0.0
  %1324 = vmatpush1.msra.mxu0 0.0
  %1325 = vmatprep.subr.mxu0 0.0
  %1326 = vmatpush1.msra.mxu0 0.0
  %1327 = vmatprep.subr.mxu0 0.0
  %1328 = vmatpush1.msra.mxu0 0.0
  %1329 = vmatprep.subr.mxu0 0.0
  %1330 = vmatpush1.msra.mxu0 0.0
  %1331 = vmatprep.subr.mxu0 0.0
  %1332 = vmatpush1.msra.mxu0 0.0
  %1333 = vmatprep.subr.mxu0 0.0
  %1334 = vmatpush1.msra.mxu0 0.0
  %1335 = vmatprep.subr.mxu0 0.0
  %1336 = vmatpush1.msra.mxu0 0.0
  %1337 = vmatprep.subr.mxu0 0.0
  %1338 = vmatpush1.msra.mxu0 0.0
  %1339 = vmatprep.subr.mxu0 0.0
  %1340 = vmatpush1.msra.mxu0 0.0
  %1341 = vmatprep.subr.mxu0 0.0
  %1342 = vmatpush1.msra.mxu0 0.0
  %1343 = vmatprep.subr.mxu0 0.0
  %1344 = vmatpush1.msra.mxu0 0.0
  %1345 = vmatprep.subr.mxu0 0.0
  %1346 = vmatpush1.msra.mxu0 0.0
  %1347 = vmatprep.subr.mxu0 0.0
  %1348 = vmatpush1.msra.mxu0 0.0
  %1349 = vmatprep.subr.mxu0 0.0
  %1350 = vmatpush1.msra.mxu0 0.0
  %1351 = vmatprep.subr.mxu0 0.0
  %1352 = vmatpush1.msra.mxu0 0.0
  %1353 = vmatprep.mubr.f32.mxu0 0.0
  %1354 = vmatmul.mubr.f32.gmra.mrb[0].mxu0 %v1284
  %v1355 = vpop.f32.mrb[0].mxu0
  %v1356 = vadd.f32 0.0, %v1355
  %v1357 = vpop.f32.mrb[0].mxu0
  %v1358 = vadd.f32 0.0, %v1357
  %1359 = vdwg.mxu0
  %1360 = vmatprep.subr.mxu0 0.0
  %1361 = vmatpush1.msra.mxu0 %v21
  %1362 = vmatprep.subr.mxu0 0.0
  %1363 = vmatpush1.msra.mxu0 %v24
  %1364 = vmatprep.subr.mxu0 0.0
  %1365 = vmatpush1.msra.mxu0 %v27
  %1366 = vmatprep.subr.mxu0 0.0
  %1367 = vmatpush1.msra.mxu0 %v30
  %1368 = vmatprep.subr.mxu0 0.0
  %1369 = vmatpush1.msra.mxu0 %v33
  %1370 = vmatprep.subr.mxu0 0.0
  %1371 = vmatpush1.msra.mxu0 %v36
  %1372 = vmatprep.subr.mxu0 0.0
  %1373 = vmatpush1.msra.mxu0 %v39
  %1374 = vmatprep.subr.mxu0 0.0
  %1375 = vmatpush1.msra.mxu0 %v42
  %1376 = vmatprep.subr.mxu0 0.0
  %1377 = vmatpush1.msra.mxu0 %v45
  %1378 = vmatprep.subr.mxu0 0.0
  %1379 = vmatpush1.msra.mxu0 %v48
  %1380 = vmatprep.subr.mxu0 0.0
  %1381 = vmatpush1.msra.mxu0 %v51
  %1382 = vmatprep.subr.mxu0 0.0
  %1383 = vmatpush1.msra.mxu0 %v54
  %1384 = vmatprep.subr.mxu0 0.0
  %1385 = vmatpush1.msra.mxu0 %v57
  %1386 = vmatprep.subr.mxu0 0.0
  %1387 = vmatpush1.msra.mxu0 %v60
  %1388 = vmatprep.subr.mxu0 0.0
  %1389 = vmatpush1.msra.mxu0 %v63
  %1390 = vmatprep.subr.mxu0 0.0
  %1391 = vmatpush1.msra.mxu0 %v66
  %1392 = vmatprep.subr.mxu0 0.0
  %1393 = vmatpush1.msra.mxu0 0.0
  %1394 = vmatprep.subr.mxu0 0.0
  %1395 = vmatpush1.msra.mxu0 0.0
  %1396 = vmatprep.subr.mxu0 0.0
  %1397 = vmatpush1.msra.mxu0 0.0
  %1398 = vmatprep.subr.mxu0 0.0
  %1399 = vmatpush1.msra.mxu0 0.0
  %1400 = vmatprep.subr.mxu0 0.0
  %1401 = vmatpush1.msra.mxu0 0.0
  %1402 = vmatprep.subr.mxu0 0.0
  %1403 = vmatpush1.msra.mxu0 0.0
  %1404 = vmatprep.subr.mxu0 0.0
  %1405 = vmatpush1.msra.mxu0 0.0
  %1406 = vmatprep.subr.mxu0 0.0
  %1407 = vmatpush1.msra.mxu0 0.0
  %1408 = vmatprep.subr.mxu0 0.0
  %1409 = vmatpush1.msra.mxu0 0.0
  %1410 = vmatprep.subr.mxu0 0.0
  %1411 = vmatpush1.msra.mxu0 0.0
  %1412 = vmatprep.subr.mxu0 0.0
  %1413 = vmatpush1.msra.mxu0 0.0
  %1414 = vmatprep.subr.mxu0 0.0
  %1415 = vmatpush1.msra.mxu0 0.0
  %1416 = vmatprep.subr.mxu0 0.0
  %1417 = vmatpush1.msra.mxu0 0.0
  %1418 = vmatprep.subr.mxu0 0.0
  %1419 = vmatpush1.msra.mxu0 0.0
  %1420 = vmatprep.subr.mxu0 0.0
  %1421 = vmatpush1.msra.mxu0 0.0
  %1422 = vmatprep.subr.mxu0 0.0
  %1423 = vmatpush1.msra.mxu0 0.0
  %1424 = vmatprep.mubr.f32.mxu0 0.0
  %1425 = vmatmul.mubr.f32.gmra.mrb[0].mxu0 %v1284
  %v1426 = vpop.f32.mrb[0].mxu0
  %v1427 = vadd.f32 0.0, %v1426
  %v1428 = vpop.f32.mrb[0].mxu0
  %1429 = vdwg.mxu0
  %v1430 = vadd.f32 %v1286, %v1356
  %v1431 = vadd.f32 %v1287, %v1358
  %v1432 = vxor.u32 %v1430, 2147483648
  %v1433 = vxor.u32 %v1431, 2147483648
  %v1434 = vmul.f32 %v1432, 1.442695
  %v1435 = vpow.pop %v1434
  %v1436 = vmul.f32 %v1433, 1.442695
  %v1437 = vpow.pop %v1436
  %v1438 = vadd.f32 %v1435, 1.0
  %v1439 = vadd.f32 %v1437, 1.0
  %v1440 = vrcp.pop %v1438
  %v1441 = vmul.f32 1.0, %v1440
  %v1442 = vrcp.pop %v1439
  %v1443 = vmul.f32 1.0, %v1442
  %v1444 = vadd.f32 %v1427, %v231
  %v1445 = vmul.f32 %v1441, %v1444
  %v1446 = vadd.f32 %v1288, %v1445
  %v1447 = vtanh.pop %v1446
  %v1448 = vsub.f32 1.0, %v1443
  %v1449 = vmul.f32 %v1448, %v1447
  %v1450 = vmul.f32 %v1443, %v1284
  %v1451 = vadd.f32 %v1449, %v1450
  %s1452 = sadd.s32 %s241, 7
  %p1453 = scmp.lt.s32.totalorder %s1452, 8
  %s1454 = scalar_select %p1453, 1, 0
  %v1455 = vstv %s1454
  %vm1456 = vcmp.eq.s32.totalorder %v1455, 1
  %v1457 = vsel %vm1456, %v1451, %v1284
  %1458 = vst [vmem:[%s3] sm:$0xff] %v1457
  // Predicated region
  $region18: #{recurrent_encoder.3} parent=0 // pred_check
    _
  $region19: #{recurrent_encoder.3} parent=0 // pred_check_branch
    %1460 = sbr.rel (0) target = $region21
  $region20: #{recurrent_encoder.3} parent=0 // pred_region
    _
  $region21: #{recurrent_encoder.3} parent=0 // pred_fallthru
    _
  // Predicated region
  $region22: #{recurrent_encoder.3} parent=0 // pred_check
    _
  $region23: #{recurrent_encoder.3} parent=0 // pred_check_branch
    %1462 = sbr.rel (0) target = $region25
  $region24: #{recurrent_encoder.3} parent=0 // pred_region
    _
  $region25: #{recurrent_encoder.3} parent=0 // pred_fallthru
    _

</llo_original>
